<compile_context>
chip_gen: v5e
topology: v5e:2x2
jax: 0.10.0
libtpu: 0.0.40
codegen_flags: <defaults>
</compile_context>

<pallas_src>
import jax
import jax.numpy as jnp
from jax.experimental import pallas as pl
from jax.experimental.pallas import tpu as pltpu

K = 5      # conv kernel size
PAD = 2    # 'same' padding for k=5, stride=1


def _round_up(n, m):
    return ((n + m - 1) // m) * m


def _conv1d_same(x, w_ref, b_ref):
    """'same' 1D conv, stride 1.

    x: (B, L, Cin) f32 value; w_ref: (K*Cin, Cout) ref (row index = t*Cin + c);
    b_ref: (1, Cout) ref.  Returns (B, L, Cout) f32.
    """
    bt, length, cin = x.shape
    cout = w_ref.shape[1]
    zpad = jnp.zeros((bt, PAD, cin), jnp.float32)
    xp = jnp.concatenate([zpad, x, zpad], axis=1)          # (B, L+2P, Cin)

    if cin == 1:
        # K*Cin = 5 is a degenerate contraction: 5 broadcast FMAs on the VPU
        # (kept f32 on all generations; v5e's VPU has no bf16).
        w_all = w_ref[...]                                 # (K, Cout)
        acc = jnp.zeros((bt, length, cout), jnp.float32)
        for t in range(K):                                 # static unroll, K=5
            acc = acc + xp[:, t:t + length, :] * w_all[t:t + 1, :][None, :, :]
        y = acc
    else:
        # im2col over taps, batch folded into M: one 2D MXU matmul with
        # M = B*L and contraction K*Cin (80/160) instead of B tiny pushes.
        slab = jnp.concatenate([xp[:, t:t + length, :] for t in range(K)],
                               axis=2)                     # (B, L, K*Cin)
        y2d = jnp.dot(slab.reshape(bt * length, K * cin), w_ref[...],
                      preferred_element_type=jnp.float32)  # (B*L, Cout)
        y = y2d.reshape(bt, length, cout)
    return y + b_ref[...]                                  # (1, Cout) broadcast


def _relu_maxpool3s2(z, buf_ref):
    """ReLU then MaxPool1d(kernel=3, stride=2) along axis 1 (length).

    z: (B, L, C) value; buf_ref: (B, L, C) VMEM scratch.
    Returns (B, L_out, C), L_out = (L - 3)//2 + 1.

    pooled[j] = max(relu(z)[2j], relu(z)[2j+1], relu(z)[2j+2]); the stride-2
    gather is three sublane-strided VMEM reads of the staged activations --
    no selection matmul, no per-step iota/compare/broadcast.
    """
    bt, length, ch = z.shape
    l_out = (length - 3) // 2 + 1
    buf_ref[...] = jnp.maximum(z, 0.0)
    p0 = buf_ref[:, pl.ds(0, l_out, stride=2), :]          # rows 2j
    p1 = buf_ref[:, pl.ds(1, l_out, stride=2), :]          # rows 2j+1
    p2 = buf_ref[:, pl.ds(2, l_out, stride=2), :]          # rows 2j+2
    return jnp.maximum(jnp.maximum(p0, p1), p2)            # (B, L_out, C)


def local_network_kernel(x_ref, w1_ref, b1_ref, w2_ref, b2_ref,
                         w3_ref, b3_ref, w4_ref, b4_ref, o_ref,
                         buf1_ref, buf2_ref):
    x = x_ref[...][..., None]                      # (B, L, 1): channel axis for conv1
    z = _conv1d_same(x, w1_ref, b1_ref)            # (B, L, 16)
    z = _conv1d_same(z, w2_ref, b2_ref)            # (B, L, 16)
    z = _relu_maxpool3s2(z, buf1_ref)              # (B, L1, 16)
    z = _conv1d_same(z, w3_ref, b3_ref)            # (B, L1, 32)
    z = _conv1d_same(z, w4_ref, b4_ref)            # (B, L1, 32)
    z = _relu_maxpool3s2(z, buf2_ref)              # (B, L2, 32)
    bt = z.shape[0]
    o_ref[...] = z.reshape(bt, -1).astype(o_ref.dtype)   # lane-dense (B, L2*32)


def local_network(x, params, *, batch_tile=None):
    """x: (N, 1, L) float32, params: (w1,b1,...,w4,b4) in PyTorch Conv1d layout."""
    w1, b1, w2, b2, w3, b3, w4, b4 = params
    N, cin, L = x.shape
    assert cin == 1
    assert L >= 7, "need L >= 7 so both MaxPool1d(3,2) stages are non-empty"
    L1 = (L - 3) // 2 + 1
    L2 = (L1 - 3) // 2 + 1

    B = batch_tile if batch_tile is not None else min(64, _round_up(N, 8))
    B = _round_up(B, 8)
    Np = _round_up(N, B)

    # Lane-dense input: (N, 1, L) -> (Np, L); pad batch rows (sliced off at the end).
    xt = x[:, 0, :]
    if Np != N:
        xt = jnp.concatenate([xt, jnp.zeros((Np - N, L), xt.dtype)], axis=0)

    def prep_w(w):  # (Cout, Cin, K) -> (K*Cin, Cout), row index = t*Cin + c
        cout, ci, k = w.shape
        return jnp.transpose(w, (2, 1, 0)).reshape(k * ci, cout)

    w1t, w2t, w3t, w4t = prep_w(w1), prep_w(w2), prep_w(w3), prep_w(w4)
    b1r, b2r, b3r, b4r = (b.reshape(1, -1) for b in (b1, b2, b3, b4))

    out = pl.pallas_call(
        local_network_kernel,
        out_shape=jax.ShapeDtypeStruct((Np, L2 * 32), jnp.float32),
        grid_spec=pltpu.PrefetchScalarGridSpec(
            num_scalar_prefetch=0,
            grid=(Np // B,),
            in_specs=[
                pl.BlockSpec((B, L), lambda i: (i, 0)),        # x batch tile (lane-dense)
                pl.BlockSpec((K * 1, 16), lambda i: (0, 0)),   # w1 (5, 16)
                pl.BlockSpec((1, 16), lambda i: (0, 0)),       # b1
                pl.BlockSpec((K * 16, 16), lambda i: (0, 0)),  # w2 (80, 16)
                pl.BlockSpec((1, 16), lambda i: (0, 0)),       # b2
                pl.BlockSpec((K * 16, 32), lambda i: (0, 0)),  # w3 (80, 32)
                pl.BlockSpec((1, 32), lambda i: (0, 0)),       # b3
                pl.BlockSpec((K * 32, 32), lambda i: (0, 0)),  # w4 (160, 32)
                pl.BlockSpec((1, 32), lambda i: (0, 0)),       # b4
            ],
            out_specs=pl.BlockSpec((B, L2 * 32), lambda i: (i, 0)),  # lane-dense output
            scratch_shapes=[
                pltpu.VMEM((B, L, 16), jnp.float32),   # staged relu(z) for pool 1
                pltpu.VMEM((B, L1, 32), jnp.float32),  # staged relu(z) for pool 2
            ],
        ),
        compiler_params=pltpu.CompilerParams(
            dimension_semantics=("parallel",)),   # batch tiles are independent
    )(xt, w1t, b1r, w2t, b2r, w3t, b3r, w4t, b4r)

    # (Np, L2*32) -> (N, 32, L2): back to PyTorch NCW layout (wrapper glue).
    return jnp.transpose(out[:N].reshape(N, L2, 32), (0, 2, 1))


def reference(x, params):
    """Pure-JAX reference matching PyTorch semantics exactly (NCW)."""
    w1, b1, w2, b2, w3, b3, w4, b4 = params
    dn = ('NCH', 'OIH', 'NCH')

    def conv(z, w, b):
        y = jax.lax.conv_general_dilated(z, w, (1,), [(PAD, PAD)], dimension_numbers=dn)
        return y + b[None, :, None]

    def maxpool(z):
        return jax.lax.reduce_window(z, -jnp.inf, jax.lax.max,
                                     (1, 1, 3), (1, 1, 2), 'VALID')

    z = conv(x, w1, b1)
    z = conv(z, w2, b2)
    z = maxpool(jax.nn.relu(z))
    z = conv(z, w3, b3)
    z = conv(z, w4, b4)
    z = maxpool(jax.nn.relu(z))
    return z


def init_params(key):
    """Deterministic PyTorch-style Conv1d init (uniform +/- 1/sqrt(fan_in))."""
    def conv_init(k, cout, cin, ksize):
        kw, kb = jax.random.split(k)
        bound = 1.0 / (cin * ksize) ** 0.5
        w = jax.random.uniform(kw, (cout, cin, ksize), jnp.float32, -bound, bound)
        b = jax.random.uniform(kb, (cout,), jnp.float32, -bound, bound)
        return w, b

    k1, k2, k3, k4 = jax.random.split(key, 4)
    w1, b1 = conv_init(k1, 16, 1, K)
    w2, b2 = conv_init(k2, 16, 16, K)
    w3, b3 = conv_init(k3, 32, 16, K)
    w4, b4 = conv_init(k4, 32, 32, K)
    return (w1, b1, w2, b2, w3, b3, w4, b4)


if __name__ == "__main__":
    key = jax.random.PRNGKey(0)
    kx1, kx2, kp = jax.random.split(key, 3)
    params = init_params(kp)

    # Case 1: the small spec-sized example (batch padded up to one 8-row tile).
    x1 = jax.random.normal(kx1, (2, 1, 16), jnp.float32)
    out1 = jax.block_until_ready(local_network(x1, params))
    ref1 = reference(x1, params)
    assert out1.shape == ref1.shape, (out1.shape, ref1.shape)
    assert jnp.allclose(out1, ref1, rtol=1e-4, atol=1e-4), "mismatch vs reference (case 1)"

    # Case 2: odd length + batch padding + multiple grid steps (3 tiles of 8).
    x2 = jax.random.normal(kx2, (20, 1, 33), jnp.float32)
    out2 = jax.block_until_ready(local_network(x2, params, batch_tile=8))
    ref2 = reference(x2, params)
    assert out2.shape == ref2.shape, (out2.shape, ref2.shape)
    assert jnp.allclose(out2, ref2, rtol=1e-4, atol=1e-4), "mismatch vs reference (case 2)"

    print("KERNEL_OK")
</pallas_src>

<mosaic_0001>
module attributes {stable_mosaic.version = 11 : i64} {
  func.func @local_network_kernel(%arg0: i32, %arg1: memref<8x16xf32, #tpu.memory_space<vmem>>, %arg2: memref<5x16xf32, #tpu.memory_space<vmem>>, %arg3: memref<1x16xf32, #tpu.memory_space<vmem>>, %arg4: memref<80x16xf32, #tpu.memory_space<vmem>>, %arg5: memref<1x16xf32, #tpu.memory_space<vmem>>, %arg6: memref<80x32xf32, #tpu.memory_space<vmem>>, %arg7: memref<1x32xf32, #tpu.memory_space<vmem>>, %arg8: memref<160x32xf32, #tpu.memory_space<vmem>>, %arg9: memref<1x32xf32, #tpu.memory_space<vmem>>, %arg10: memref<8x96xf32, #tpu.memory_space<vmem>>, %arg11: memref<8x16x16xf32, #tpu.memory_space<vmem>>, %arg12: memref<8x7x32xf32, #tpu.memory_space<vmem>>) attributes {dimension_semantics = [#tpu.dimension_semantics<parallel>], iteration_bounds = array<i64: 1>, scalar_prefetch = 0 : i64, scratch_operands = 2 : i64, tpu.core_type = #tpu.core_type<tc>, window_params = [{transform_indices = @transform_0, window_bounds = array<i64: 8, 16>}, {pipeline_mode = #tpu.pipeline_mode<synchronous>, transform_indices = @transform_1, window_bounds = array<i64: 5, 16>}, {pipeline_mode = #tpu.pipeline_mode<synchronous>, transform_indices = @transform_2, window_bounds = array<i64: 1, 16>}, {pipeline_mode = #tpu.pipeline_mode<synchronous>, transform_indices = @transform_3, window_bounds = array<i64: 80, 16>}, {pipeline_mode = #tpu.pipeline_mode<synchronous>, transform_indices = @transform_4, window_bounds = array<i64: 1, 16>}, {pipeline_mode = #tpu.pipeline_mode<synchronous>, transform_indices = @transform_5, window_bounds = array<i64: 80, 32>}, {pipeline_mode = #tpu.pipeline_mode<synchronous>, transform_indices = @transform_6, window_bounds = array<i64: 1, 32>}, {pipeline_mode = #tpu.pipeline_mode<synchronous>, transform_indices = @transform_7, window_bounds = array<i64: 160, 32>}, {pipeline_mode = #tpu.pipeline_mode<synchronous>, transform_indices = @transform_8, window_bounds = array<i64: 1, 32>}, {transform_indices = @transform_9, window_bounds = array<i64: 8, 96>}]} {
    %c0 = arith.constant 0 : index
    %c0_0 = arith.constant 0 : index
    %0 = vector.load %arg1[%c0, %c0_0] : memref<8x16xf32, #tpu.memory_space<vmem>>, vector<8x16xf32>
    %1 = vector.shape_cast %0 : vector<8x16xf32> to vector<8x16x1xf32>
    %cst = arith.constant 0.000000e+00 : f32
    %2 = vector.broadcast %cst : f32 to vector<8x2x1xf32>
    %3 = tpu.concatenate %2, %1, %2 in 1 : vector<8x2x1xf32>, vector<8x16x1xf32>, vector<8x2x1xf32> -> vector<8x20x1xf32>
    %c0_1 = arith.constant 0 : index
    %c0_2 = arith.constant 0 : index
    %4 = vector.load %arg2[%c0_1, %c0_2] : memref<5x16xf32, #tpu.memory_space<vmem>>, vector<5x16xf32>
    %cst_3 = arith.constant 0.000000e+00 : f32
    %5 = vector.broadcast %cst_3 : f32 to vector<8x16x16xf32>
    %6 = vector.extract_strided_slice %3 {offsets = [0, 0, 0], sizes = [8, 16, 1], strides = [1, 1, 1]} : vector<8x20x1xf32> to vector<8x16x1xf32>
    %7 = vector.extract_strided_slice %4 {offsets = [0, 0], sizes = [1, 16], strides = [1, 1]} : vector<5x16xf32> to vector<1x16xf32>
    %8 = vector.shape_cast %7 : vector<1x16xf32> to vector<1x1x16xf32>
    %9 = vector.broadcast %6 : vector<8x16x1xf32> to vector<8x16x16xf32>
    %10 = vector.broadcast %8 : vector<1x1x16xf32> to vector<8x16x16xf32>
    %11 = arith.mulf %9, %10 : vector<8x16x16xf32>
    %12 = arith.addf %5, %11 : vector<8x16x16xf32>
    %13 = vector.extract_strided_slice %3 {offsets = [0, 1, 0], sizes = [8, 16, 1], strides = [1, 1, 1]} : vector<8x20x1xf32> to vector<8x16x1xf32>
    %14 = vector.extract_strided_slice %4 {offsets = [1, 0], sizes = [1, 16], strides = [1, 1]} : vector<5x16xf32> to vector<1x16xf32>
    %15 = vector.shape_cast %14 : vector<1x16xf32> to vector<1x1x16xf32>
    %16 = vector.broadcast %13 : vector<8x16x1xf32> to vector<8x16x16xf32>
    %17 = vector.broadcast %15 : vector<1x1x16xf32> to vector<8x16x16xf32>
    %18 = arith.mulf %16, %17 : vector<8x16x16xf32>
    %19 = arith.addf %12, %18 : vector<8x16x16xf32>
    %20 = vector.extract_strided_slice %3 {offsets = [0, 2, 0], sizes = [8, 16, 1], strides = [1, 1, 1]} : vector<8x20x1xf32> to vector<8x16x1xf32>
    %21 = vector.extract_strided_slice %4 {offsets = [2, 0], sizes = [1, 16], strides = [1, 1]} : vector<5x16xf32> to vector<1x16xf32>
    %22 = vector.shape_cast %21 : vector<1x16xf32> to vector<1x1x16xf32>
    %23 = vector.broadcast %20 : vector<8x16x1xf32> to vector<8x16x16xf32>
    %24 = vector.broadcast %22 : vector<1x1x16xf32> to vector<8x16x16xf32>
    %25 = arith.mulf %23, %24 : vector<8x16x16xf32>
    %26 = arith.addf %19, %25 : vector<8x16x16xf32>
    %27 = vector.extract_strided_slice %3 {offsets = [0, 3, 0], sizes = [8, 16, 1], strides = [1, 1, 1]} : vector<8x20x1xf32> to vector<8x16x1xf32>
    %28 = vector.extract_strided_slice %4 {offsets = [3, 0], sizes = [1, 16], strides = [1, 1]} : vector<5x16xf32> to vector<1x16xf32>
    %29 = vector.shape_cast %28 : vector<1x16xf32> to vector<1x1x16xf32>
    %30 = vector.broadcast %27 : vector<8x16x1xf32> to vector<8x16x16xf32>
    %31 = vector.broadcast %29 : vector<1x1x16xf32> to vector<8x16x16xf32>
    %32 = arith.mulf %30, %31 : vector<8x16x16xf32>
    %33 = arith.addf %26, %32 : vector<8x16x16xf32>
    %34 = vector.extract_strided_slice %3 {offsets = [0, 4, 0], sizes = [8, 16, 1], strides = [1, 1, 1]} : vector<8x20x1xf32> to vector<8x16x1xf32>
    %35 = vector.extract_strided_slice %4 {offsets = [4, 0], sizes = [1, 16], strides = [1, 1]} : vector<5x16xf32> to vector<1x16xf32>
    %36 = vector.shape_cast %35 : vector<1x16xf32> to vector<1x1x16xf32>
    %37 = vector.broadcast %34 : vector<8x16x1xf32> to vector<8x16x16xf32>
    %38 = vector.broadcast %36 : vector<1x1x16xf32> to vector<8x16x16xf32>
    %39 = arith.mulf %37, %38 : vector<8x16x16xf32>
    %40 = arith.addf %33, %39 : vector<8x16x16xf32>
    %c0_4 = arith.constant 0 : index
    %c0_5 = arith.constant 0 : index
    %41 = vector.load %arg3[%c0_4, %c0_5] : memref<1x16xf32, #tpu.memory_space<vmem>>, vector<1x16xf32>
    %42 = vector.shape_cast %41 : vector<1x16xf32> to vector<1x1x16xf32>
    %43 = vector.broadcast %42 : vector<1x1x16xf32> to vector<8x16x16xf32>
    %44 = arith.addf %40, %43 : vector<8x16x16xf32>
    %cst_6 = arith.constant 0.000000e+00 : f32
    %45 = vector.broadcast %cst_6 : f32 to vector<8x2x16xf32>
    %46 = tpu.concatenate %45, %44, %45 in 1 : vector<8x2x16xf32>, vector<8x16x16xf32>, vector<8x2x16xf32> -> vector<8x20x16xf32>
    %47 = vector.extract_strided_slice %46 {offsets = [0, 0, 0], sizes = [8, 16, 16], strides = [1, 1, 1]} : vector<8x20x16xf32> to vector<8x16x16xf32>
    %48 = vector.extract_strided_slice %46 {offsets = [0, 1, 0], sizes = [8, 16, 16], strides = [1, 1, 1]} : vector<8x20x16xf32> to vector<8x16x16xf32>
    %49 = vector.extract_strided_slice %46 {offsets = [0, 2, 0], sizes = [8, 16, 16], strides = [1, 1, 1]} : vector<8x20x16xf32> to vector<8x16x16xf32>
    %50 = vector.extract_strided_slice %46 {offsets = [0, 3, 0], sizes = [8, 16, 16], strides = [1, 1, 1]} : vector<8x20x16xf32> to vector<8x16x16xf32>
    %51 = vector.extract_strided_slice %46 {offsets = [0, 4, 0], sizes = [8, 16, 16], strides = [1, 1, 1]} : vector<8x20x16xf32> to vector<8x16x16xf32>
    %52 = tpu.concatenate %47, %48, %49, %50, %51 in 2 : vector<8x16x16xf32>, vector<8x16x16xf32>, vector<8x16x16xf32>, vector<8x16x16xf32>, vector<8x16x16xf32> -> vector<8x16x80xf32>
    %53 = vector.shape_cast %52 : vector<8x16x80xf32> to vector<128x80xf32>
    %c0_7 = arith.constant 0 : index
    %c0_8 = arith.constant 0 : index
    %54 = vector.load %arg4[%c0_7, %c0_8] : memref<80x16xf32, #tpu.memory_space<vmem>>, vector<80x16xf32>
    %cst_9 = arith.constant dense<0.000000e+00> : vector<128x16xf32>
    %55 = tpu.matmul %53, %54, %cst_9 {dimension_numbers = #tpu.dot_dimension_numbers<[1], [0], [0], [1], [0, 0, 1, 1], [], []>} : vector<128x80xf32>, vector<80x16xf32>, vector<128x16xf32> -> vector<128x16xf32>
    %56 = vector.shape_cast %55 : vector<128x16xf32> to vector<8x16x16xf32>
    %c0_10 = arith.constant 0 : index
    %c0_11 = arith.constant 0 : index
    %57 = vector.load %arg5[%c0_10, %c0_11] : memref<1x16xf32, #tpu.memory_space<vmem>>, vector<1x16xf32>
    %58 = vector.shape_cast %57 : vector<1x16xf32> to vector<1x1x16xf32>
    %59 = vector.broadcast %58 : vector<1x1x16xf32> to vector<8x16x16xf32>
    %60 = arith.addf %56, %59 : vector<8x16x16xf32>
    %cst_12 = arith.constant 0.000000e+00 : f32
    %61 = vector.broadcast %cst_12 : f32 to vector<8x16x16xf32>
    %62 = arith.maximumf %60, %61 : vector<8x16x16xf32>
    %c0_13 = arith.constant 0 : index
    %c0_14 = arith.constant 0 : index
    %c0_15 = arith.constant 0 : index
    %63 = vector.load %arg11[%c0_13, %c0_14, %c0_15] : memref<8x16x16xf32, #tpu.memory_space<vmem>>, vector<8x16x16xf32>
    tpu.vector_store %arg11[%c0_13, %c0_14, %c0_15], %62 {strides = array<i32>} : memref<8x16x16xf32, #tpu.memory_space<vmem>>, vector<8x16x16xf32>,
    %c0_16 = arith.constant 0 : index
    %c0_17 = arith.constant 0 : index
    %c0_18 = arith.constant 0 : index
    %64 = tpu.strided_load %arg11[%c0_16, %c0_17, %c0_18] {strides = array<i32: 1, 2, 1>} : memref<8x16x16xf32, #tpu.memory_space<vmem>>, vector<8x7x16xf32>
    %c0_19 = arith.constant 0 : index
    %c1 = arith.constant 1 : index
    %c0_20 = arith.constant 0 : index
    %65 = tpu.strided_load %arg11[%c0_19, %c1, %c0_20] {strides = array<i32: 1, 2, 1>} : memref<8x16x16xf32, #tpu.memory_space<vmem>>, vector<8x7x16xf32>
    %c0_21 = arith.constant 0 : index
    %c2 = arith.constant 2 : index
    %c0_22 = arith.constant 0 : index
    %66 = tpu.strided_load %arg11[%c0_21, %c2, %c0_22] {strides = array<i32: 1, 2, 1>} : memref<8x16x16xf32, #tpu.memory_space<vmem>>, vector<8x7x16xf32>
    %67 = arith.maximumf %64, %65 : vector<8x7x16xf32>
    %68 = arith.maximumf %67, %66 : vector<8x7x16xf32>
    %cst_23 = arith.constant 0.000000e+00 : f32
    %69 = vector.broadcast %cst_23 : f32 to vector<8x2x16xf32>
    %70 = tpu.concatenate %69, %68, %69 in 1 : vector<8x2x16xf32>, vector<8x7x16xf32>, vector<8x2x16xf32> -> vector<8x11x16xf32>
    %71 = vector.extract_strided_slice %70 {offsets = [0, 0, 0], sizes = [8, 7, 16], strides = [1, 1, 1]} : vector<8x11x16xf32> to vector<8x7x16xf32>
    %72 = vector.extract_strided_slice %70 {offsets = [0, 1, 0], sizes = [8, 7, 16], strides = [1, 1, 1]} : vector<8x11x16xf32> to vector<8x7x16xf32>
    %73 = vector.extract_strided_slice %70 {offsets = [0, 2, 0], sizes = [8, 7, 16], strides = [1, 1, 1]} : vector<8x11x16xf32> to vector<8x7x16xf32>
    %74 = vector.extract_strided_slice %70 {offsets = [0, 3, 0], sizes = [8, 7, 16], strides = [1, 1, 1]} : vector<8x11x16xf32> to vector<8x7x16xf32>
    %75 = vector.extract_strided_slice %70 {offsets = [0, 4, 0], sizes = [8, 7, 16], strides = [1, 1, 1]} : vector<8x11x16xf32> to vector<8x7x16xf32>
    %76 = tpu.concatenate %71, %72, %73, %74, %75 in 2 : vector<8x7x16xf32>, vector<8x7x16xf32>, vector<8x7x16xf32>, vector<8x7x16xf32>, vector<8x7x16xf32> -> vector<8x7x80xf32>
    %77 = vector.shape_cast %76 : vector<8x7x80xf32> to vector<56x80xf32>
    %c0_24 = arith.constant 0 : index
    %c0_25 = arith.constant 0 : index
    %78 = vector.load %arg6[%c0_24, %c0_25] : memref<80x32xf32, #tpu.memory_space<vmem>>, vector<80x32xf32>
    %cst_26 = arith.constant dense<0.000000e+00> : vector<56x32xf32>
    %79 = tpu.matmul %77, %78, %cst_26 {dimension_numbers = #tpu.dot_dimension_numbers<[1], [0], [0], [1], [0, 0, 1, 1], [], []>} : vector<56x80xf32>, vector<80x32xf32>, vector<56x32xf32> -> vector<56x32xf32>
    %80 = vector.shape_cast %79 : vector<56x32xf32> to vector<8x7x32xf32>
    %c0_27 = arith.constant 0 : index
    %c0_28 = arith.constant 0 : index
    %81 = vector.load %arg7[%c0_27, %c0_28] : memref<1x32xf32, #tpu.memory_space<vmem>>, vector<1x32xf32>
    %82 = vector.shape_cast %81 : vector<1x32xf32> to vector<1x1x32xf32>
    %83 = vector.broadcast %82 : vector<1x1x32xf32> to vector<8x7x32xf32>
    %84 = arith.addf %80, %83 : vector<8x7x32xf32>
    %cst_29 = arith.constant 0.000000e+00 : f32
    %85 = vector.broadcast %cst_29 : f32 to vector<8x2x32xf32>
    %86 = tpu.concatenate %85, %84, %85 in 1 : vector<8x2x32xf32>, vector<8x7x32xf32>, vector<8x2x32xf32> -> vector<8x11x32xf32>
    %87 = vector.extract_strided_slice %86 {offsets = [0, 0, 0], sizes = [8, 7, 32], strides = [1, 1, 1]} : vector<8x11x32xf32> to vector<8x7x32xf32>
    %88 = vector.extract_strided_slice %86 {offsets = [0, 1, 0], sizes = [8, 7, 32], strides = [1, 1, 1]} : vector<8x11x32xf32> to vector<8x7x32xf32>
    %89 = vector.extract_strided_slice %86 {offsets = [0, 2, 0], sizes = [8, 7, 32], strides = [1, 1, 1]} : vector<8x11x32xf32> to vector<8x7x32xf32>
    %90 = vector.extract_strided_slice %86 {offsets = [0, 3, 0], sizes = [8, 7, 32], strides = [1, 1, 1]} : vector<8x11x32xf32> to vector<8x7x32xf32>
    %91 = vector.extract_strided_slice %86 {offsets = [0, 4, 0], sizes = [8, 7, 32], strides = [1, 1, 1]} : vector<8x11x32xf32> to vector<8x7x32xf32>
    %92 = tpu.concatenate %87, %88, %89, %90, %91 in 2 : vector<8x7x32xf32>, vector<8x7x32xf32>, vector<8x7x32xf32>, vector<8x7x32xf32>, vector<8x7x32xf32> -> vector<8x7x160xf32>
    %93 = vector.shape_cast %92 : vector<8x7x160xf32> to vector<56x160xf32>
    %c0_30 = arith.constant 0 : index
    %c0_31 = arith.constant 0 : index
    %94 = vector.load %arg8[%c0_30, %c0_31] : memref<160x32xf32, #tpu.memory_space<vmem>>, vector<160x32xf32>
    %cst_32 = arith.constant dense<0.000000e+00> : vector<56x32xf32>
    %95 = tpu.matmul %93, %94, %cst_32 {dimension_numbers = #tpu.dot_dimension_numbers<[1], [0], [0], [1], [0, 0, 1, 1], [], []>} : vector<56x160xf32>, vector<160x32xf32>, vector<56x32xf32> -> vector<56x32xf32>
    %96 = vector.shape_cast %95 : vector<56x32xf32> to vector<8x7x32xf32>
    %c0_33 = arith.constant 0 : index
    %c0_34 = arith.constant 0 : index
    %97 = vector.load %arg9[%c0_33, %c0_34] : memref<1x32xf32, #tpu.memory_space<vmem>>, vector<1x32xf32>
    %98 = vector.shape_cast %97 : vector<1x32xf32> to vector<1x1x32xf32>
    %99 = vector.broadcast %98 : vector<1x1x32xf32> to vector<8x7x32xf32>
    %100 = arith.addf %96, %99 : vector<8x7x32xf32>
    %cst_35 = arith.constant 0.000000e+00 : f32
    %101 = vector.broadcast %cst_35 : f32 to vector<8x7x32xf32>
    %102 = arith.maximumf %100, %101 : vector<8x7x32xf32>
    %c0_36 = arith.constant 0 : index
    %c0_37 = arith.constant 0 : index
    %c0_38 = arith.constant 0 : index
    %103 = vector.load %arg12[%c0_36, %c0_37, %c0_38] : memref<8x7x32xf32, #tpu.memory_space<vmem>>, vector<8x7x32xf32>
    tpu.vector_store %arg12[%c0_36, %c0_37, %c0_38], %102 {strides = array<i32>} : memref<8x7x32xf32, #tpu.memory_space<vmem>>, vector<8x7x32xf32>,
    %c0_39 = arith.constant 0 : index
    %c0_40 = arith.constant 0 : index
    %c0_41 = arith.constant 0 : index
    %104 = tpu.strided_load %arg12[%c0_39, %c0_40, %c0_41] {strides = array<i32: 1, 2, 1>} : memref<8x7x32xf32, #tpu.memory_space<vmem>>, vector<8x3x32xf32>
    %c0_42 = arith.constant 0 : index
    %c1_43 = arith.constant 1 : index
    %c0_44 = arith.constant 0 : index
    %105 = tpu.strided_load %arg12[%c0_42, %c1_43, %c0_44] {strides = array<i32: 1, 2, 1>} : memref<8x7x32xf32, #tpu.memory_space<vmem>>, vector<8x3x32xf32>
    %c0_45 = arith.constant 0 : index
    %c2_46 = arith.constant 2 : index
    %c0_47 = arith.constant 0 : index
    %106 = tpu.strided_load %arg12[%c0_45, %c2_46, %c0_47] {strides = array<i32: 1, 2, 1>} : memref<8x7x32xf32, #tpu.memory_space<vmem>>, vector<8x3x32xf32>
    %107 = arith.maximumf %104, %105 : vector<8x3x32xf32>
    %108 = arith.maximumf %107, %106 : vector<8x3x32xf32>
    %109 = vector.shape_cast %108 : vector<8x3x32xf32> to vector<8x96xf32>
    %c0_48 = arith.constant 0 : index
    %c0_49 = arith.constant 0 : index
    %110 = vector.load %arg10[%c0_48, %c0_49] : memref<8x96xf32, #tpu.memory_space<vmem>>, vector<8x96xf32>
    tpu.vector_store %arg10[%c0_48, %c0_49], %109 {strides = array<i32>} : memref<8x96xf32, #tpu.memory_space<vmem>>, vector<8x96xf32>,
    return
  }
  func.func @transform_0(%arg0: i32) -> (i32, i32) {
    %c0_i32 = arith.constant 0 : i32
    %c0_i32_0 = arith.constant 0 : i32
    return %arg0, %c0_i32 : i32, i32
  }
  func.func @transform_1(%arg0: i32) -> (i32, i32) {
    %c0_i32 = arith.constant 0 : i32
    %c0_i32_0 = arith.constant 0 : i32
    %c0_i32_1 = arith.constant 0 : i32
    return %c0_i32, %c0_i32_0 : i32, i32
  }
  func.func @transform_2(%arg0: i32) -> (i32, i32) {
    %c0_i32 = arith.constant 0 : i32
    %c0_i32_0 = arith.constant 0 : i32
    %c0_i32_1 = arith.constant 0 : i32
    return %c0_i32, %c0_i32_0 : i32, i32
  }
  func.func @transform_3(%arg0: i32) -> (i32, i32) {
    %c0_i32 = arith.constant 0 : i32
    %c0_i32_0 = arith.constant 0 : i32
    %c0_i32_1 = arith.constant 0 : i32
    return %c0_i32, %c0_i32_0 : i32, i32
  }
  func.func @transform_4(%arg0: i32) -> (i32, i32) {
    %c0_i32 = arith.constant 0 : i32
    %c0_i32_0 = arith.constant 0 : i32
    %c0_i32_1 = arith.constant 0 : i32
    return %c0_i32, %c0_i32_0 : i32, i32
  }
  func.func @transform_5(%arg0: i32) -> (i32, i32) {
    %c0_i32 = arith.constant 0 : i32
    %c0_i32_0 = arith.constant 0 : i32
    %c0_i32_1 = arith.constant 0 : i32
    return %c0_i32, %c0_i32_0 : i32, i32
  }
  func.func @transform_6(%arg0: i32) -> (i32, i32) {
    %c0_i32 = arith.constant 0 : i32
    %c0_i32_0 = arith.constant 0 : i32
    %c0_i32_1 = arith.constant 0 : i32
    return %c0_i32, %c0_i32_0 : i32, i32
  }
  func.func @transform_7(%arg0: i32) -> (i32, i32) {
    %c0_i32 = arith.constant 0 : i32
    %c0_i32_0 = arith.constant 0 : i32
    %c0_i32_1 = arith.constant 0 : i32
    return %c0_i32, %c0_i32_0 : i32, i32
  }
  func.func @transform_8(%arg0: i32) -> (i32, i32) {
    %c0_i32 = arith.constant 0 : i32
    %c0_i32_0 = arith.constant 0 : i32
    %c0_i32_1 = arith.constant 0 : i32
    return %c0_i32, %c0_i32_0 : i32, i32
  }
  func.func @transform_9(%arg0: i32) -> (i32, i32) {
    %c0_i32 = arith.constant 0 : i32
    %c0_i32_0 = arith.constant 0 : i32
    return %arg0, %c0_i32 : i32, i32
  }
}

</mosaic_0001>

<llo_original>
// kernel: tpu_custom_call.1
$region0: #{tpu_custom_call.1}
  #allocation0 [shape = 'u32[]', space=smem, size = 0x4, offset = 0x4, fixed_abs, tag = 'smem constant byte address 0x4 - core index']
  #allocation1 [shape = 'u32[72,128]{1,0:T(1,128)}', space=vmem, size = 0x9000, scoped, tag = 'internal scratch']
  #allocation2 [shape = 'f32[8,16,16]{2,1,0:T(8,128)}', space=vmem, size = 0x10000, scoped, tag = 'scratch operand']
  #allocation3 [shape = 'f32[8,7,32]{2,1,0:T(8,128)}', space=vmem, size = 0x8000, scoped, tag = 'scratch operand']
  %s0 = inlined_call_operand.vmem [shape: f32[8,16], index: 0, kind: input, shape index: {}]
  %s1 = inlined_call_operand.vmem [shape: f32[5,16], index: 1, kind: input, shape index: {}]
  %s2 = inlined_call_operand.vmem [shape: f32[1,16], index: 2, kind: input, shape index: {}]
  %s3 = inlined_call_operand.vmem [shape: f32[80,16], index: 3, kind: input, shape index: {}]
  %s4 = inlined_call_operand.vmem [shape: f32[1,16], index: 4, kind: input, shape index: {}]
  %s5 = inlined_call_operand.vmem [shape: f32[80,32], index: 5, kind: input, shape index: {}]
  %s6 = inlined_call_operand.vmem [shape: f32[1,32], index: 6, kind: input, shape index: {}]
  %s7 = inlined_call_operand.vmem [shape: f32[160,32], index: 7, kind: input, shape index: {}]
  %s8 = inlined_call_operand.vmem [shape: f32[1,32], index: 8, kind: input, shape index: {}]
  %s9 = inlined_call_operand.hbm [shape: f32[8,96], index: 9, kind: output, shape index: {}]
  %s10 = sld [smem:[#allocation0]]
  $region46: #{tpu_custom_call.1} parent=0
    _
  %s12 = ssub.s32 1, %s10
  %s13 = scalar_select 0, %s12, %s10
  $region1: #{tpu_custom_call.1} parent=0
    #allocation4 [shape = 'u8[4096]{0}', space=vmem, size = 0x1000, scoped, tag = 'output window, operand 0, single buffered']
    #allocation5 [shape = 's32[1]{0}', space=sflag, size = 0x4, scoped, tag = 'scoped memory for tpu_custom_call.1']
    %14 = vsyncpa [#allocation5], 0
    // Predicated region
    $region2: #{tpu_custom_call.1} parent=1 // pred_check
      _
    $region3: #{tpu_custom_call.1} parent=1 // pred_check_branch
      %16 = sbr.rel (0) target = $region5
    $region4: #{tpu_custom_call.1} parent=1 // pred_region
      _
    $region5: #{tpu_custom_call.1} parent=1 // pred_fallthru
      _
    // Predicated region
    $region6: #{tpu_custom_call.1} parent=1 // pred_check
      _
    $region7: #{tpu_custom_call.1} parent=1 // pred_check_branch
      %18 = sbr.rel (0) target = $region9
    $region8: #{tpu_custom_call.1} parent=1 // pred_region
      _
    $region9: #{tpu_custom_call.1} parent=1 // pred_fallthru
      _
    // Predicated region
    $region10: #{tpu_custom_call.1} parent=1 // pred_check
      _
    $region11: #{tpu_custom_call.1} parent=1 // pred_check_branch
      %20 = sbr.rel (0) target = $region13
    $region12: #{tpu_custom_call.1} parent=1 // pred_region
      _
    $region13: #{tpu_custom_call.1} parent=1 // pred_fallthru
      _
    // Predicated region
    $region14: #{tpu_custom_call.1} parent=1 // pred_check
      _
    $region15: #{tpu_custom_call.1} parent=1 // pred_check_branch
      %22 = sbr.rel (0) target = $region17
    $region16: #{tpu_custom_call.1} parent=1 // pred_region
      _
    $region17: #{tpu_custom_call.1} parent=1 // pred_fallthru
      _
    // Predicated region
    $region18: #{tpu_custom_call.1} parent=1 // pred_check
      _
    $region19: #{tpu_custom_call.1} parent=1 // pred_check_branch
      %24 = sbr.rel (0) target = $region21
    $region20: #{tpu_custom_call.1} parent=1 // pred_region
      _
    $region21: #{tpu_custom_call.1} parent=1 // pred_fallthru
      _
    // Predicated region
    $region22: #{tpu_custom_call.1} parent=1 // pred_check
      _
    $region23: #{tpu_custom_call.1} parent=1 // pred_check_branch
      %26 = sbr.rel (0) target = $region25
    $region24: #{tpu_custom_call.1} parent=1 // pred_region
      _
    $region25: #{tpu_custom_call.1} parent=1 // pred_fallthru
      _
    // Predicated region
    $region26: #{tpu_custom_call.1} parent=1 // pred_check
      _
    $region27: #{tpu_custom_call.1} parent=1 // pred_check_branch
      %28 = sbr.rel (0) target = $region29
    $region28: #{tpu_custom_call.1} parent=1 // pred_region
      _
    $region29: #{tpu_custom_call.1} parent=1 // pred_fallthru
      _
    // Predicated region
    $region30: #{tpu_custom_call.1} parent=1 // pred_check
      _
    $region31: #{tpu_custom_call.1} parent=1 // pred_check_branch
      %30 = sbr.rel (0) target = $region33
    $region32: #{tpu_custom_call.1} parent=1 // pred_region
      _
    $region33: #{tpu_custom_call.1} parent=1 // pred_fallthru
      _
    // Predicated region
    $region34: #{tpu_custom_call.1} parent=1 // pred_check
      _
    $region35: #{tpu_custom_call.1} parent=1 // pred_check_branch
      %32 = sbr.rel (0) target = $region37
    $region36: #{tpu_custom_call.1} parent=1 // pred_region
      _
    $region37: #{tpu_custom_call.1} parent=1 // pred_fallthru
      _
    %v33 = vld [vmem:[%s0] sm:$0xff]
    %v34 = vperm.slane %v33, 0
    %v35 = vlaneseq
    %v36 = vshrl.u32 %v35, 7
    %38 = vset.pattern.permute.xlu0 %v36
    %39 = vperm.xlu0 %38, %v34
    %v40 = vpop.permute.xlu0 %39
    %v41 = vlaneseq
    %v42 = vshrl.u32 %v41, 7
    %v43 = vadd.s32 %v42, 8
    %44 = vset.pattern.permute.xlu0 %v43
    %45 = vperm.xlu0 %44, %v34
    %v46 = vpop.permute.xlu0 %45
    %v47 = vperm.slane %v33, 1
    %v48 = vlaneseq
    %v49 = vshrl.u32 %v48, 7
    %51 = vset.pattern.permute.xlu0 %v49
    %52 = vperm.xlu0 %51, %v47
    %v53 = vpop.permute.xlu0 %52
    %v54 = vlaneseq
    %v55 = vshrl.u32 %v54, 7
    %v56 = vadd.s32 %v55, 8
    %57 = vset.pattern.permute.xlu0 %v56
    %58 = vperm.xlu0 %57, %v47
    %v59 = vpop.permute.xlu0 %58
    %v60 = vperm.slane %v33, 2
    %v61 = vlaneseq
    %v62 = vshrl.u32 %v61, 7
    %64 = vset.pattern.permute.xlu0 %v62
    %65 = vperm.xlu0 %64, %v60
    %v66 = vpop.permute.xlu0 %65
    %v67 = vlaneseq
    %v68 = vshrl.u32 %v67, 7
    %v69 = vadd.s32 %v68, 8
    %70 = vset.pattern.permute.xlu0 %v69
    %71 = vperm.xlu0 %70, %v60
    %v72 = vpop.permute.xlu0 %71
    %v73 = vperm.slane %v33, 3
    %v74 = vlaneseq
    %v75 = vshrl.u32 %v74, 7
    %77 = vset.pattern.permute.xlu0 %v75
    %78 = vperm.xlu0 %77, %v73
    %v79 = vpop.permute.xlu0 %78
    %v80 = vlaneseq
    %v81 = vshrl.u32 %v80, 7
    %v82 = vadd.s32 %v81, 8
    %83 = vset.pattern.permute.xlu0 %v82
    %84 = vperm.xlu0 %83, %v73
    %v85 = vpop.permute.xlu0 %84
    %v86 = vperm.slane %v33, 4
    %v87 = vlaneseq
    %v88 = vshrl.u32 %v87, 7
    %90 = vset.pattern.permute.xlu0 %v88
    %91 = vperm.xlu0 %90, %v86
    %v92 = vpop.permute.xlu0 %91
    %v93 = vlaneseq
    %v94 = vshrl.u32 %v93, 7
    %v95 = vadd.s32 %v94, 8
    %96 = vset.pattern.permute.xlu0 %v95
    %97 = vperm.xlu0 %96, %v86
    %v98 = vpop.permute.xlu0 %97
    %v99 = vperm.slane %v33, 5
    %v100 = vlaneseq
    %v101 = vshrl.u32 %v100, 7
    %103 = vset.pattern.permute.xlu0 %v101
    %104 = vperm.xlu0 %103, %v99
    %v105 = vpop.permute.xlu0 %104
    %v106 = vlaneseq
    %v107 = vshrl.u32 %v106, 7
    %v108 = vadd.s32 %v107, 8
    %109 = vset.pattern.permute.xlu0 %v108
    %110 = vperm.xlu0 %109, %v99
    %v111 = vpop.permute.xlu0 %110
    %v112 = vperm.slane %v33, 6
    %v113 = vlaneseq
    %v114 = vshrl.u32 %v113, 7
    %116 = vset.pattern.permute.xlu0 %v114
    %117 = vperm.xlu0 %116, %v112
    %v118 = vpop.permute.xlu0 %117
    %v119 = vlaneseq
    %v120 = vshrl.u32 %v119, 7
    %v121 = vadd.s32 %v120, 8
    %122 = vset.pattern.permute.xlu0 %v121
    %123 = vperm.xlu0 %122, %v112
    %v124 = vpop.permute.xlu0 %123
    %v125 = vperm.slane %v33, 7
    %v126 = vlaneseq
    %v127 = vshrl.u32 %v126, 7
    %129 = vset.pattern.permute.xlu0 %v127
    %130 = vperm.xlu0 %129, %v125
    %v131 = vpop.permute.xlu0 %130
    %v132 = vlaneseq
    %v133 = vshrl.u32 %v132, 7
    %v134 = vadd.s32 %v133, 8
    %135 = vset.pattern.permute.xlu0 %v134
    %136 = vperm.xlu0 %135, %v125
    %v137 = vpop.permute.xlu0 %136
    %vm154 = vcmask 1041408
    %v155 = vrot.slane %v40, 6
    %v156 = vrot.slane %v46, 6
    %v157 = vsel %vm154, %v155, %v156
    %v158 = vrot.slane %v53, 6
    %v159 = vrot.slane %v59, 6
    %v160 = vsel %vm154, %v158, %v159
    %v161 = vrot.slane %v66, 6
    %v162 = vrot.slane %v72, 6
    %v163 = vsel %vm154, %v161, %v162
    %v164 = vrot.slane %v79, 6
    %v165 = vrot.slane %v85, 6
    %v166 = vsel %vm154, %v164, %v165
    %v167 = vrot.slane %v92, 6
    %v168 = vrot.slane %v98, 6
    %v169 = vsel %vm154, %v167, %v168
    %v170 = vrot.slane %v105, 6
    %v171 = vrot.slane %v111, 6
    %v172 = vsel %vm154, %v170, %v171
    %v173 = vrot.slane %v118, 6
    %v174 = vrot.slane %v124, 6
    %v175 = vsel %vm154, %v173, %v174
    %v176 = vrot.slane %v131, 6
    %v177 = vrot.slane %v137, 6
    %v178 = vsel %vm154, %v176, %v177
    %v195 = vsel %vm154, 0.0, %v155
    %v196 = vsel %vm154, 0.0, %v158
    %v197 = vsel %vm154, 0.0, %v161
    %v198 = vsel %vm154, 0.0, %v164
    %v199 = vsel %vm154, 0.0, %v167
    %v200 = vsel %vm154, 0.0, %v170
    %v201 = vsel %vm154, 0.0, %v173
    %v202 = vsel %vm154, 0.0, %v176
    %v203 = vsel %vm154, %v156, 0.0
    %v204 = vsel %vm154, %v159, 0.0
    %v205 = vsel %vm154, %v162, 0.0
    %v206 = vsel %vm154, %v165, 0.0
    %v207 = vsel %vm154, %v168, 0.0
    %v208 = vsel %vm154, %v171, 0.0
    %v209 = vsel %vm154, %v174, 0.0
    %v210 = vsel %vm154, %v177, 0.0
    %v211 = vld [vmem:[%s1] sm:$0x1f]
    %213 = vset.pattern.permute.xlu0 0
    %214 = vperm.xlu0 %213, %v195
    %v215 = vpop.permute.xlu0 %214
    %217 = vset.pattern.permute.xlu0 0
    %218 = vperm.xlu0 %217, %v157
    %v219 = vpop.permute.xlu0 %218
    %222 = vset.pattern.permute.xlu0 0
    %223 = vperm.xlu0 %222, %v196
    %v224 = vpop.permute.xlu0 %223
    %226 = vset.pattern.permute.xlu0 0
    %227 = vperm.xlu0 %226, %v160
    %v228 = vpop.permute.xlu0 %227
    %231 = vset.pattern.permute.xlu0 0
    %232 = vperm.xlu0 %231, %v197
    %v233 = vpop.permute.xlu0 %232
    %235 = vset.pattern.permute.xlu0 0
    %236 = vperm.xlu0 %235, %v163
    %v237 = vpop.permute.xlu0 %236
    %240 = vset.pattern.permute.xlu0 0
    %241 = vperm.xlu0 %240, %v198
    %v242 = vpop.permute.xlu0 %241
    %244 = vset.pattern.permute.xlu0 0
    %245 = vperm.xlu0 %244, %v166
    %v246 = vpop.permute.xlu0 %245
    %249 = vset.pattern.permute.xlu0 0
    %250 = vperm.xlu0 %249, %v199
    %v251 = vpop.permute.xlu0 %250
    %253 = vset.pattern.permute.xlu0 0
    %254 = vperm.xlu0 %253, %v169
    %v255 = vpop.permute.xlu0 %254
    %258 = vset.pattern.permute.xlu0 0
    %259 = vperm.xlu0 %258, %v200
    %v260 = vpop.permute.xlu0 %259
    %262 = vset.pattern.permute.xlu0 0
    %263 = vperm.xlu0 %262, %v172
    %v264 = vpop.permute.xlu0 %263
    %267 = vset.pattern.permute.xlu0 0
    %268 = vperm.xlu0 %267, %v201
    %v269 = vpop.permute.xlu0 %268
    %271 = vset.pattern.permute.xlu0 0
    %272 = vperm.xlu0 %271, %v175
    %v273 = vpop.permute.xlu0 %272
    %276 = vset.pattern.permute.xlu0 0
    %277 = vperm.xlu0 %276, %v202
    %v278 = vpop.permute.xlu0 %277
    %280 = vset.pattern.permute.xlu0 0
    %281 = vperm.xlu0 %280, %v178
    %v282 = vpop.permute.xlu0 %281
    %v284 = vperm.slane %v211, 0
    %v285 = vmul.f32 %v215, %v284
    %v286 = vmul.f32 %v219, %v284
    %v287 = vmul.f32 %v224, %v284
    %v288 = vmul.f32 %v228, %v284
    %v289 = vmul.f32 %v233, %v284
    %v290 = vmul.f32 %v237, %v284
    %v291 = vmul.f32 %v242, %v284
    %v292 = vmul.f32 %v246, %v284
    %v293 = vmul.f32 %v251, %v284
    %v294 = vmul.f32 %v255, %v284
    %v295 = vmul.f32 %v260, %v284
    %v296 = vmul.f32 %v264, %v284
    %v297 = vmul.f32 %v269, %v284
    %v298 = vmul.f32 %v273, %v284
    %v299 = vmul.f32 %v278, %v284
    %v300 = vmul.f32 %v282, %v284
    %v301 = vadd.f32 %v285, 0.0
    %v302 = vadd.f32 %v286, 0.0
    %v303 = vadd.f32 %v287, 0.0
    %v304 = vadd.f32 %v288, 0.0
    %v305 = vadd.f32 %v289, 0.0
    %v306 = vadd.f32 %v290, 0.0
    %v307 = vadd.f32 %v291, 0.0
    %v308 = vadd.f32 %v292, 0.0
    %v309 = vadd.f32 %v293, 0.0
    %v310 = vadd.f32 %v294, 0.0
    %v311 = vadd.f32 %v295, 0.0
    %v312 = vadd.f32 %v296, 0.0
    %v313 = vadd.f32 %v297, 0.0
    %v314 = vadd.f32 %v298, 0.0
    %v315 = vadd.f32 %v299, 0.0
    %v316 = vadd.f32 %v300, 0.0
    %318 = vset.pattern.permute.xlu0 0
    %319 = vperm.xlu0 %318, %v203
    %v320 = vpop.permute.xlu0 %319
    %323 = vset.pattern.permute.xlu0 0
    %324 = vperm.xlu0 %323, %v204
    %v325 = vpop.permute.xlu0 %324
    %328 = vset.pattern.permute.xlu0 0
    %329 = vperm.xlu0 %328, %v205
    %v330 = vpop.permute.xlu0 %329
    %333 = vset.pattern.permute.xlu0 0
    %334 = vperm.xlu0 %333, %v206
    %v335 = vpop.permute.xlu0 %334
    %338 = vset.pattern.permute.xlu0 0
    %339 = vperm.xlu0 %338, %v207
    %v340 = vpop.permute.xlu0 %339
    %343 = vset.pattern.permute.xlu0 0
    %344 = vperm.xlu0 %343, %v208
    %v345 = vpop.permute.xlu0 %344
    %348 = vset.pattern.permute.xlu0 0
    %349 = vperm.xlu0 %348, %v209
    %v350 = vpop.permute.xlu0 %349
    %353 = vset.pattern.permute.xlu0 0
    %354 = vperm.xlu0 %353, %v210
    %v355 = vpop.permute.xlu0 %354
    %v357 = vperm.slane %v211, 1
    %v358 = vmul.f32 %v215, %v357
    %v359 = vmul.f32 %v219, %v357
    %v360 = vmul.f32 %v320, %v357
    %v361 = vmul.f32 %v224, %v357
    %v362 = vmul.f32 %v228, %v357
    %v363 = vmul.f32 %v325, %v357
    %v364 = vmul.f32 %v233, %v357
    %v365 = vmul.f32 %v237, %v357
    %v366 = vmul.f32 %v330, %v357
    %v367 = vmul.f32 %v242, %v357
    %v368 = vmul.f32 %v246, %v357
    %v369 = vmul.f32 %v335, %v357
    %v370 = vmul.f32 %v251, %v357
    %v371 = vmul.f32 %v255, %v357
    %v372 = vmul.f32 %v340, %v357
    %v373 = vmul.f32 %v260, %v357
    %v374 = vmul.f32 %v264, %v357
    %v375 = vmul.f32 %v345, %v357
    %v376 = vmul.f32 %v269, %v357
    %v377 = vmul.f32 %v273, %v357
    %v378 = vmul.f32 %v350, %v357
    %v379 = vmul.f32 %v278, %v357
    %v380 = vmul.f32 %v282, %v357
    %v381 = vmul.f32 %v355, %v357
    %vm406 = vcmask 1046528
    %v407 = vrot.slane %v358, 1
    %v408 = vrot.slane %v359, 1
    %v409 = vsel %vm406, %v407, %v408
    %v410 = vrot.slane %v360, 1
    %v411 = vsel %vm406, %v408, %v410
    %v412 = vrot.slane %v361, 1
    %v413 = vrot.slane %v362, 1
    %v414 = vsel %vm406, %v412, %v413
    %v415 = vrot.slane %v363, 1
    %v416 = vsel %vm406, %v413, %v415
    %v417 = vrot.slane %v364, 1
    %v418 = vrot.slane %v365, 1
    %v419 = vsel %vm406, %v417, %v418
    %v420 = vrot.slane %v366, 1
    %v421 = vsel %vm406, %v418, %v420
    %v422 = vrot.slane %v367, 1
    %v423 = vrot.slane %v368, 1
    %v424 = vsel %vm406, %v422, %v423
    %v425 = vrot.slane %v369, 1
    %v426 = vsel %vm406, %v423, %v425
    %v427 = vrot.slane %v370, 1
    %v428 = vrot.slane %v371, 1
    %v429 = vsel %vm406, %v427, %v428
    %v430 = vrot.slane %v372, 1
    %v431 = vsel %vm406, %v428, %v430
    %v432 = vrot.slane %v373, 1
    %v433 = vrot.slane %v374, 1
    %v434 = vsel %vm406, %v432, %v433
    %v435 = vrot.slane %v375, 1
    %v436 = vsel %vm406, %v433, %v435
    %v437 = vrot.slane %v376, 1
    %v438 = vrot.slane %v377, 1
    %v439 = vsel %vm406, %v437, %v438
    %v440 = vrot.slane %v378, 1
    %v441 = vsel %vm406, %v438, %v440
    %v442 = vrot.slane %v379, 1
    %v443 = vrot.slane %v380, 1
    %v444 = vsel %vm406, %v442, %v443
    %v445 = vrot.slane %v381, 1
    %v446 = vsel %vm406, %v443, %v445
    %v463 = vadd.f32 %v301, %v409
    %v464 = vadd.f32 %v302, %v411
    %v465 = vadd.f32 %v303, %v414
    %v466 = vadd.f32 %v304, %v416
    %v467 = vadd.f32 %v305, %v419
    %v468 = vadd.f32 %v306, %v421
    %v469 = vadd.f32 %v307, %v424
    %v470 = vadd.f32 %v308, %v426
    %v471 = vadd.f32 %v309, %v429
    %v472 = vadd.f32 %v310, %v431
    %v473 = vadd.f32 %v311, %v434
    %v474 = vadd.f32 %v312, %v436
    %v475 = vadd.f32 %v313, %v439
    %v476 = vadd.f32 %v314, %v441
    %v477 = vadd.f32 %v315, %v444
    %v478 = vadd.f32 %v316, %v446
    %v479 = vperm.slane %v211, 2
    %v480 = vmul.f32 %v215, %v479
    %v481 = vmul.f32 %v219, %v479
    %v482 = vmul.f32 %v320, %v479
    %v483 = vmul.f32 %v224, %v479
    %v484 = vmul.f32 %v228, %v479
    %v485 = vmul.f32 %v325, %v479
    %v486 = vmul.f32 %v233, %v479
    %v487 = vmul.f32 %v237, %v479
    %v488 = vmul.f32 %v330, %v479
    %v489 = vmul.f32 %v242, %v479
    %v490 = vmul.f32 %v246, %v479
    %v491 = vmul.f32 %v335, %v479
    %v492 = vmul.f32 %v251, %v479
    %v493 = vmul.f32 %v255, %v479
    %v494 = vmul.f32 %v340, %v479
    %v495 = vmul.f32 %v260, %v479
    %v496 = vmul.f32 %v264, %v479
    %v497 = vmul.f32 %v345, %v479
    %v498 = vmul.f32 %v269, %v479
    %v499 = vmul.f32 %v273, %v479
    %v500 = vmul.f32 %v350, %v479
    %v501 = vmul.f32 %v278, %v479
    %v502 = vmul.f32 %v282, %v479
    %v503 = vmul.f32 %v355, %v479
    %vm528 = vcmask 1045504
    %v529 = vrot.slane %v480, 2
    %v530 = vrot.slane %v481, 2
    %v531 = vsel %vm528, %v529, %v530
    %v532 = vrot.slane %v482, 2
    %v533 = vsel %vm528, %v530, %v532
    %v534 = vrot.slane %v483, 2
    %v535 = vrot.slane %v484, 2
    %v536 = vsel %vm528, %v534, %v535
    %v537 = vrot.slane %v485, 2
    %v538 = vsel %vm528, %v535, %v537
    %v539 = vrot.slane %v486, 2
    %v540 = vrot.slane %v487, 2
    %v541 = vsel %vm528, %v539, %v540
    %v542 = vrot.slane %v488, 2
    %v543 = vsel %vm528, %v540, %v542
    %v544 = vrot.slane %v489, 2
    %v545 = vrot.slane %v490, 2
    %v546 = vsel %vm528, %v544, %v545
    %v547 = vrot.slane %v491, 2
    %v548 = vsel %vm528, %v545, %v547
    %v549 = vrot.slane %v492, 2
    %v550 = vrot.slane %v493, 2
    %v551 = vsel %vm528, %v549, %v550
    %v552 = vrot.slane %v494, 2
    %v553 = vsel %vm528, %v550, %v552
    %v554 = vrot.slane %v495, 2
    %v555 = vrot.slane %v496, 2
    %v556 = vsel %vm528, %v554, %v555
    %v557 = vrot.slane %v497, 2
    %v558 = vsel %vm528, %v555, %v557
    %v559 = vrot.slane %v498, 2
    %v560 = vrot.slane %v499, 2
    %v561 = vsel %vm528, %v559, %v560
    %v562 = vrot.slane %v500, 2
    %v563 = vsel %vm528, %v560, %v562
    %v564 = vrot.slane %v501, 2
    %v565 = vrot.slane %v502, 2
    %v566 = vsel %vm528, %v564, %v565
    %v567 = vrot.slane %v503, 2
    %v568 = vsel %vm528, %v565, %v567
    %v585 = vadd.f32 %v463, %v531
    %v586 = vadd.f32 %v464, %v533
    %v587 = vadd.f32 %v465, %v536
    %v588 = vadd.f32 %v466, %v538
    %v589 = vadd.f32 %v467, %v541
    %v590 = vadd.f32 %v468, %v543
    %v591 = vadd.f32 %v469, %v546
    %v592 = vadd.f32 %v470, %v548
    %v593 = vadd.f32 %v471, %v551
    %v594 = vadd.f32 %v472, %v553
    %v595 = vadd.f32 %v473, %v556
    %v596 = vadd.f32 %v474, %v558
    %v597 = vadd.f32 %v475, %v561
    %v598 = vadd.f32 %v476, %v563
    %v599 = vadd.f32 %v477, %v566
    %v600 = vadd.f32 %v478, %v568
    %v601 = vperm.slane %v211, 3
    %v602 = vmul.f32 %v215, %v601
    %v603 = vmul.f32 %v219, %v601
    %v604 = vmul.f32 %v320, %v601
    %v605 = vmul.f32 %v224, %v601
    %v606 = vmul.f32 %v228, %v601
    %v607 = vmul.f32 %v325, %v601
    %v608 = vmul.f32 %v233, %v601
    %v609 = vmul.f32 %v237, %v601
    %v610 = vmul.f32 %v330, %v601
    %v611 = vmul.f32 %v242, %v601
    %v612 = vmul.f32 %v246, %v601
    %v613 = vmul.f32 %v335, %v601
    %v614 = vmul.f32 %v251, %v601
    %v615 = vmul.f32 %v255, %v601
    %v616 = vmul.f32 %v340, %v601
    %v617 = vmul.f32 %v260, %v601
    %v618 = vmul.f32 %v264, %v601
    %v619 = vmul.f32 %v345, %v601
    %v620 = vmul.f32 %v269, %v601
    %v621 = vmul.f32 %v273, %v601
    %v622 = vmul.f32 %v350, %v601
    %v623 = vmul.f32 %v278, %v601
    %v624 = vmul.f32 %v282, %v601
    %v625 = vmul.f32 %v355, %v601
    %vm650 = vcmask 1044480
    %v651 = vrot.slane %v602, 3
    %v652 = vrot.slane %v603, 3
    %v653 = vsel %vm650, %v651, %v652
    %v654 = vrot.slane %v604, 3
    %v655 = vsel %vm650, %v652, %v654
    %v656 = vrot.slane %v605, 3
    %v657 = vrot.slane %v606, 3
    %v658 = vsel %vm650, %v656, %v657
    %v659 = vrot.slane %v607, 3
    %v660 = vsel %vm650, %v657, %v659
    %v661 = vrot.slane %v608, 3
    %v662 = vrot.slane %v609, 3
    %v663 = vsel %vm650, %v661, %v662
    %v664 = vrot.slane %v610, 3
    %v665 = vsel %vm650, %v662, %v664
    %v666 = vrot.slane %v611, 3
    %v667 = vrot.slane %v612, 3
    %v668 = vsel %vm650, %v666, %v667
    %v669 = vrot.slane %v613, 3
    %v670 = vsel %vm650, %v667, %v669
    %v671 = vrot.slane %v614, 3
    %v672 = vrot.slane %v615, 3
    %v673 = vsel %vm650, %v671, %v672
    %v674 = vrot.slane %v616, 3
    %v675 = vsel %vm650, %v672, %v674
    %v676 = vrot.slane %v617, 3
    %v677 = vrot.slane %v618, 3
    %v678 = vsel %vm650, %v676, %v677
    %v679 = vrot.slane %v619, 3
    %v680 = vsel %vm650, %v677, %v679
    %v681 = vrot.slane %v620, 3
    %v682 = vrot.slane %v621, 3
    %v683 = vsel %vm650, %v681, %v682
    %v684 = vrot.slane %v622, 3
    %v685 = vsel %vm650, %v682, %v684
    %v686 = vrot.slane %v623, 3
    %v687 = vrot.slane %v624, 3
    %v688 = vsel %vm650, %v686, %v687
    %v689 = vrot.slane %v625, 3
    %v690 = vsel %vm650, %v687, %v689
    %v707 = vadd.f32 %v585, %v653
    %v708 = vadd.f32 %v586, %v655
    %v709 = vadd.f32 %v587, %v658
    %v710 = vadd.f32 %v588, %v660
    %v711 = vadd.f32 %v589, %v663
    %v712 = vadd.f32 %v590, %v665
    %v713 = vadd.f32 %v591, %v668
    %v714 = vadd.f32 %v592, %v670
    %v715 = vadd.f32 %v593, %v673
    %v716 = vadd.f32 %v594, %v675
    %v717 = vadd.f32 %v595, %v678
    %v718 = vadd.f32 %v596, %v680
    %v719 = vadd.f32 %v597, %v683
    %v720 = vadd.f32 %v598, %v685
    %v721 = vadd.f32 %v599, %v688
    %v722 = vadd.f32 %v600, %v690
    %v723 = vperm.slane %v211, 4
    %v724 = vmul.f32 %v215, %v723
    %v725 = vmul.f32 %v219, %v723
    %v726 = vmul.f32 %v320, %v723
    %v727 = vmul.f32 %v224, %v723
    %v728 = vmul.f32 %v228, %v723
    %v729 = vmul.f32 %v325, %v723
    %v730 = vmul.f32 %v233, %v723
    %v731 = vmul.f32 %v237, %v723
    %v732 = vmul.f32 %v330, %v723
    %v733 = vmul.f32 %v242, %v723
    %v734 = vmul.f32 %v246, %v723
    %v735 = vmul.f32 %v335, %v723
    %v736 = vmul.f32 %v251, %v723
    %v737 = vmul.f32 %v255, %v723
    %v738 = vmul.f32 %v340, %v723
    %v739 = vmul.f32 %v260, %v723
    %v740 = vmul.f32 %v264, %v723
    %v741 = vmul.f32 %v345, %v723
    %v742 = vmul.f32 %v269, %v723
    %v743 = vmul.f32 %v273, %v723
    %v744 = vmul.f32 %v350, %v723
    %v745 = vmul.f32 %v278, %v723
    %v746 = vmul.f32 %v282, %v723
    %v747 = vmul.f32 %v355, %v723
    %vm772 = vcmask 1043456
    %v773 = vrot.slane %v724, 4
    %v774 = vrot.slane %v725, 4
    %v775 = vsel %vm772, %v773, %v774
    %v776 = vrot.slane %v726, 4
    %v777 = vsel %vm772, %v774, %v776
    %v778 = vrot.slane %v727, 4
    %v779 = vrot.slane %v728, 4
    %v780 = vsel %vm772, %v778, %v779
    %v781 = vrot.slane %v729, 4
    %v782 = vsel %vm772, %v779, %v781
    %v783 = vrot.slane %v730, 4
    %v784 = vrot.slane %v731, 4
    %v785 = vsel %vm772, %v783, %v784
    %v786 = vrot.slane %v732, 4
    %v787 = vsel %vm772, %v784, %v786
    %v788 = vrot.slane %v733, 4
    %v789 = vrot.slane %v734, 4
    %v790 = vsel %vm772, %v788, %v789
    %v791 = vrot.slane %v735, 4
    %v792 = vsel %vm772, %v789, %v791
    %v793 = vrot.slane %v736, 4
    %v794 = vrot.slane %v737, 4
    %v795 = vsel %vm772, %v793, %v794
    %v796 = vrot.slane %v738, 4
    %v797 = vsel %vm772, %v794, %v796
    %v798 = vrot.slane %v739, 4
    %v799 = vrot.slane %v740, 4
    %v800 = vsel %vm772, %v798, %v799
    %v801 = vrot.slane %v741, 4
    %v802 = vsel %vm772, %v799, %v801
    %v803 = vrot.slane %v742, 4
    %v804 = vrot.slane %v743, 4
    %v805 = vsel %vm772, %v803, %v804
    %v806 = vrot.slane %v744, 4
    %v807 = vsel %vm772, %v804, %v806
    %v808 = vrot.slane %v745, 4
    %v809 = vrot.slane %v746, 4
    %v810 = vsel %vm772, %v808, %v809
    %v811 = vrot.slane %v747, 4
    %v812 = vsel %vm772, %v809, %v811
    %v829 = vadd.f32 %v707, %v775
    %v830 = vadd.f32 %v708, %v777
    %v831 = vadd.f32 %v709, %v780
    %v832 = vadd.f32 %v710, %v782
    %v833 = vadd.f32 %v711, %v785
    %v834 = vadd.f32 %v712, %v787
    %v835 = vadd.f32 %v713, %v790
    %v836 = vadd.f32 %v714, %v792
    %v837 = vadd.f32 %v715, %v795
    %v838 = vadd.f32 %v716, %v797
    %v839 = vadd.f32 %v717, %v800
    %v840 = vadd.f32 %v718, %v802
    %v841 = vadd.f32 %v719, %v805
    %v842 = vadd.f32 %v720, %v807
    %v843 = vadd.f32 %v721, %v810
    %v844 = vadd.f32 %v722, %v812
    %v845 = vld [vmem:[%s2] sm:$0x1]
    %v847 = vperm.slane %v845, 0
    %v849 = vadd.f32 %v829, %v847
    %v850 = vadd.f32 %v830, %v847
    %v851 = vadd.f32 %v831, %v847
    %v852 = vadd.f32 %v832, %v847
    %v853 = vadd.f32 %v833, %v847
    %v854 = vadd.f32 %v834, %v847
    %v855 = vadd.f32 %v835, %v847
    %v856 = vadd.f32 %v836, %v847
    %v857 = vadd.f32 %v837, %v847
    %v858 = vadd.f32 %v838, %v847
    %v859 = vadd.f32 %v839, %v847
    %v860 = vadd.f32 %v840, %v847
    %v861 = vadd.f32 %v841, %v847
    %v862 = vadd.f32 %v842, %v847
    %v863 = vadd.f32 %v843, %v847
    %v864 = vadd.f32 %v844, %v847
    %v881 = vrot.slane %v849, 6
    %v882 = vrot.slane %v850, 6
    %v883 = vsel %vm154, %v881, %v882
    %v884 = vrot.slane %v851, 6
    %v885 = vrot.slane %v852, 6
    %v886 = vsel %vm154, %v884, %v885
    %v887 = vrot.slane %v853, 6
    %v888 = vrot.slane %v854, 6
    %v889 = vsel %vm154, %v887, %v888
    %v890 = vrot.slane %v855, 6
    %v891 = vrot.slane %v856, 6
    %v892 = vsel %vm154, %v890, %v891
    %v893 = vrot.slane %v857, 6
    %v894 = vrot.slane %v858, 6
    %v895 = vsel %vm154, %v893, %v894
    %v896 = vrot.slane %v859, 6
    %v897 = vrot.slane %v860, 6
    %v898 = vsel %vm154, %v896, %v897
    %v899 = vrot.slane %v861, 6
    %v900 = vrot.slane %v862, 6
    %v901 = vsel %vm154, %v899, %v900
    %v902 = vrot.slane %v863, 6
    %v903 = vrot.slane %v864, 6
    %v904 = vsel %vm154, %v902, %v903
    %v929 = vsel %vm154, 0.0, %v881
    %v930 = vsel %vm154, 0.0, %v884
    %v931 = vsel %vm154, 0.0, %v887
    %v932 = vsel %vm154, 0.0, %v890
    %v933 = vsel %vm154, 0.0, %v893
    %v934 = vsel %vm154, 0.0, %v896
    %v935 = vsel %vm154, 0.0, %v899
    %v936 = vsel %vm154, 0.0, %v902
    %v937 = vsel %vm154, %v882, 0.0
    %v938 = vsel %vm154, %v885, 0.0
    %v939 = vsel %vm154, %v888, 0.0
    %v940 = vsel %vm154, %v891, 0.0
    %v941 = vsel %vm154, %v894, 0.0
    %v942 = vsel %vm154, %v897, 0.0
    %v943 = vsel %vm154, %v900, 0.0
    %v944 = vsel %vm154, %v903, 0.0
    %v961 = vrot.slane %v929, 1
    %v962 = vrot.slane %v883, 1
    %v963 = vsel %vm406, %v961, %v962
    %v964 = vrot.slane %v937, 1
    %v965 = vsel %vm406, %v962, %v964
    %v966 = vrot.slane %v930, 1
    %v967 = vrot.slane %v886, 1
    %v968 = vsel %vm406, %v966, %v967
    %v969 = vrot.slane %v938, 1
    %v970 = vsel %vm406, %v967, %v969
    %v971 = vrot.slane %v931, 1
    %v972 = vrot.slane %v889, 1
    %v973 = vsel %vm406, %v971, %v972
    %v974 = vrot.slane %v939, 1
    %v975 = vsel %vm406, %v972, %v974
    %v976 = vrot.slane %v932, 1
    %v977 = vrot.slane %v892, 1
    %v978 = vsel %vm406, %v976, %v977
    %v979 = vrot.slane %v940, 1
    %v980 = vsel %vm406, %v977, %v979
    %v981 = vrot.slane %v933, 1
    %v982 = vrot.slane %v895, 1
    %v983 = vsel %vm406, %v981, %v982
    %v984 = vrot.slane %v941, 1
    %v985 = vsel %vm406, %v982, %v984
    %v986 = vrot.slane %v934, 1
    %v987 = vrot.slane %v898, 1
    %v988 = vsel %vm406, %v986, %v987
    %v989 = vrot.slane %v942, 1
    %v990 = vsel %vm406, %v987, %v989
    %v991 = vrot.slane %v935, 1
    %v992 = vrot.slane %v901, 1
    %v993 = vsel %vm406, %v991, %v992
    %v994 = vrot.slane %v943, 1
    %v995 = vsel %vm406, %v992, %v994
    %v996 = vrot.slane %v936, 1
    %v997 = vrot.slane %v904, 1
    %v998 = vsel %vm406, %v996, %v997
    %v999 = vrot.slane %v944, 1
    %v1000 = vsel %vm406, %v997, %v999
    %1001 = vrot.lane.b32.xlu0 %v963, 16
    %v1002 = vpop.permute.xlu0 %1001
    %1003 = vrot.lane.b32.xlu0 %v965, 16
    %v1004 = vpop.permute.xlu0 %1003
    %1005 = vrot.lane.b32.xlu0 %v968, 16
    %v1006 = vpop.permute.xlu0 %1005
    %1007 = vrot.lane.b32.xlu0 %v970, 16
    %v1008 = vpop.permute.xlu0 %1007
    %1009 = vrot.lane.b32.xlu0 %v973, 16
    %v1010 = vpop.permute.xlu0 %1009
    %1011 = vrot.lane.b32.xlu0 %v975, 16
    %v1012 = vpop.permute.xlu0 %1011
    %1013 = vrot.lane.b32.xlu0 %v978, 16
    %v1014 = vpop.permute.xlu0 %1013
    %1015 = vrot.lane.b32.xlu0 %v980, 16
    %v1016 = vpop.permute.xlu0 %1015
    %1017 = vrot.lane.b32.xlu0 %v983, 16
    %v1018 = vpop.permute.xlu0 %1017
    %1019 = vrot.lane.b32.xlu0 %v985, 16
    %v1020 = vpop.permute.xlu0 %1019
    %1021 = vrot.lane.b32.xlu0 %v988, 16
    %v1022 = vpop.permute.xlu0 %1021
    %1023 = vrot.lane.b32.xlu0 %v990, 16
    %v1024 = vpop.permute.xlu0 %1023
    %1025 = vrot.lane.b32.xlu0 %v993, 16
    %v1026 = vpop.permute.xlu0 %1025
    %1027 = vrot.lane.b32.xlu0 %v995, 16
    %v1028 = vpop.permute.xlu0 %1027
    %1029 = vrot.lane.b32.xlu0 %v998, 16
    %v1030 = vpop.permute.xlu0 %1029
    %1031 = vrot.lane.b32.xlu0 %v1000, 16
    %v1032 = vpop.permute.xlu0 %1031
    %v1049 = vrot.slane %v929, 2
    %v1050 = vrot.slane %v883, 2
    %v1051 = vsel %vm528, %v1049, %v1050
    %v1052 = vrot.slane %v937, 2
    %v1053 = vsel %vm528, %v1050, %v1052
    %v1054 = vrot.slane %v930, 2
    %v1055 = vrot.slane %v886, 2
    %v1056 = vsel %vm528, %v1054, %v1055
    %v1057 = vrot.slane %v938, 2
    %v1058 = vsel %vm528, %v1055, %v1057
    %v1059 = vrot.slane %v931, 2
    %v1060 = vrot.slane %v889, 2
    %v1061 = vsel %vm528, %v1059, %v1060
    %v1062 = vrot.slane %v939, 2
    %v1063 = vsel %vm528, %v1060, %v1062
    %v1064 = vrot.slane %v932, 2
    %v1065 = vrot.slane %v892, 2
    %v1066 = vsel %vm528, %v1064, %v1065
    %v1067 = vrot.slane %v940, 2
    %v1068 = vsel %vm528, %v1065, %v1067
    %v1069 = vrot.slane %v933, 2
    %v1070 = vrot.slane %v895, 2
    %v1071 = vsel %vm528, %v1069, %v1070
    %v1072 = vrot.slane %v941, 2
    %v1073 = vsel %vm528, %v1070, %v1072
    %v1074 = vrot.slane %v934, 2
    %v1075 = vrot.slane %v898, 2
    %v1076 = vsel %vm528, %v1074, %v1075
    %v1077 = vrot.slane %v942, 2
    %v1078 = vsel %vm528, %v1075, %v1077
    %v1079 = vrot.slane %v935, 2
    %v1080 = vrot.slane %v901, 2
    %v1081 = vsel %vm528, %v1079, %v1080
    %v1082 = vrot.slane %v943, 2
    %v1083 = vsel %vm528, %v1080, %v1082
    %v1084 = vrot.slane %v936, 2
    %v1085 = vrot.slane %v904, 2
    %v1086 = vsel %vm528, %v1084, %v1085
    %v1087 = vrot.slane %v944, 2
    %v1088 = vsel %vm528, %v1085, %v1087
    %1089 = vrot.lane.b32.xlu0 %v1051, 32
    %v1090 = vpop.permute.xlu0 %1089
    %1091 = vrot.lane.b32.xlu0 %v1053, 32
    %v1092 = vpop.permute.xlu0 %1091
    %1093 = vrot.lane.b32.xlu0 %v1056, 32
    %v1094 = vpop.permute.xlu0 %1093
    %1095 = vrot.lane.b32.xlu0 %v1058, 32
    %v1096 = vpop.permute.xlu0 %1095
    %1097 = vrot.lane.b32.xlu0 %v1061, 32
    %v1098 = vpop.permute.xlu0 %1097
    %1099 = vrot.lane.b32.xlu0 %v1063, 32
    %v1100 = vpop.permute.xlu0 %1099
    %1101 = vrot.lane.b32.xlu0 %v1066, 32
    %v1102 = vpop.permute.xlu0 %1101
    %1103 = vrot.lane.b32.xlu0 %v1068, 32
    %v1104 = vpop.permute.xlu0 %1103
    %1105 = vrot.lane.b32.xlu0 %v1071, 32
    %v1106 = vpop.permute.xlu0 %1105
    %1107 = vrot.lane.b32.xlu0 %v1073, 32
    %v1108 = vpop.permute.xlu0 %1107
    %1109 = vrot.lane.b32.xlu0 %v1076, 32
    %v1110 = vpop.permute.xlu0 %1109
    %1111 = vrot.lane.b32.xlu0 %v1078, 32
    %v1112 = vpop.permute.xlu0 %1111
    %1113 = vrot.lane.b32.xlu0 %v1081, 32
    %v1114 = vpop.permute.xlu0 %1113
    %1115 = vrot.lane.b32.xlu0 %v1083, 32
    %v1116 = vpop.permute.xlu0 %1115
    %1117 = vrot.lane.b32.xlu0 %v1086, 32
    %v1118 = vpop.permute.xlu0 %1117
    %1119 = vrot.lane.b32.xlu0 %v1088, 32
    %v1120 = vpop.permute.xlu0 %1119
    %v1137 = vrot.slane %v929, 3
    %v1138 = vrot.slane %v883, 3
    %v1139 = vsel %vm650, %v1137, %v1138
    %v1140 = vrot.slane %v937, 3
    %v1141 = vsel %vm650, %v1138, %v1140
    %v1142 = vrot.slane %v930, 3
    %v1143 = vrot.slane %v886, 3
    %v1144 = vsel %vm650, %v1142, %v1143
    %v1145 = vrot.slane %v938, 3
    %v1146 = vsel %vm650, %v1143, %v1145
    %v1147 = vrot.slane %v931, 3
    %v1148 = vrot.slane %v889, 3
    %v1149 = vsel %vm650, %v1147, %v1148
    %v1150 = vrot.slane %v939, 3
    %v1151 = vsel %vm650, %v1148, %v1150
    %v1152 = vrot.slane %v932, 3
    %v1153 = vrot.slane %v892, 3
    %v1154 = vsel %vm650, %v1152, %v1153
    %v1155 = vrot.slane %v940, 3
    %v1156 = vsel %vm650, %v1153, %v1155
    %v1157 = vrot.slane %v933, 3
    %v1158 = vrot.slane %v895, 3
    %v1159 = vsel %vm650, %v1157, %v1158
    %v1160 = vrot.slane %v941, 3
    %v1161 = vsel %vm650, %v1158, %v1160
    %v1162 = vrot.slane %v934, 3
    %v1163 = vrot.slane %v898, 3
    %v1164 = vsel %vm650, %v1162, %v1163
    %v1165 = vrot.slane %v942, 3
    %v1166 = vsel %vm650, %v1163, %v1165
    %v1167 = vrot.slane %v935, 3
    %v1168 = vrot.slane %v901, 3
    %v1169 = vsel %vm650, %v1167, %v1168
    %v1170 = vrot.slane %v943, 3
    %v1171 = vsel %vm650, %v1168, %v1170
    %v1172 = vrot.slane %v936, 3
    %v1173 = vrot.slane %v904, 3
    %v1174 = vsel %vm650, %v1172, %v1173
    %v1175 = vrot.slane %v944, 3
    %v1176 = vsel %vm650, %v1173, %v1175
    %1177 = vrot.lane.b32.xlu0 %v1139, 48
    %v1178 = vpop.permute.xlu0 %1177
    %1179 = vrot.lane.b32.xlu0 %v1141, 48
    %v1180 = vpop.permute.xlu0 %1179
    %1181 = vrot.lane.b32.xlu0 %v1144, 48
    %v1182 = vpop.permute.xlu0 %1181
    %1183 = vrot.lane.b32.xlu0 %v1146, 48
    %v1184 = vpop.permute.xlu0 %1183
    %1185 = vrot.lane.b32.xlu0 %v1149, 48
    %v1186 = vpop.permute.xlu0 %1185
    %1187 = vrot.lane.b32.xlu0 %v1151, 48
    %v1188 = vpop.permute.xlu0 %1187
    %1189 = vrot.lane.b32.xlu0 %v1154, 48
    %v1190 = vpop.permute.xlu0 %1189
    %1191 = vrot.lane.b32.xlu0 %v1156, 48
    %v1192 = vpop.permute.xlu0 %1191
    %1193 = vrot.lane.b32.xlu0 %v1159, 48
    %v1194 = vpop.permute.xlu0 %1193
    %1195 = vrot.lane.b32.xlu0 %v1161, 48
    %v1196 = vpop.permute.xlu0 %1195
    %1197 = vrot.lane.b32.xlu0 %v1164, 48
    %v1198 = vpop.permute.xlu0 %1197
    %1199 = vrot.lane.b32.xlu0 %v1166, 48
    %v1200 = vpop.permute.xlu0 %1199
    %1201 = vrot.lane.b32.xlu0 %v1169, 48
    %v1202 = vpop.permute.xlu0 %1201
    %1203 = vrot.lane.b32.xlu0 %v1171, 48
    %v1204 = vpop.permute.xlu0 %1203
    %1205 = vrot.lane.b32.xlu0 %v1174, 48
    %v1206 = vpop.permute.xlu0 %1205
    %1207 = vrot.lane.b32.xlu0 %v1176, 48
    %v1208 = vpop.permute.xlu0 %1207
    %v1225 = vrot.slane %v929, 4
    %v1226 = vrot.slane %v883, 4
    %v1227 = vsel %vm772, %v1225, %v1226
    %v1228 = vrot.slane %v937, 4
    %v1229 = vsel %vm772, %v1226, %v1228
    %v1230 = vrot.slane %v930, 4
    %v1231 = vrot.slane %v886, 4
    %v1232 = vsel %vm772, %v1230, %v1231
    %v1233 = vrot.slane %v938, 4
    %v1234 = vsel %vm772, %v1231, %v1233
    %v1235 = vrot.slane %v931, 4
    %v1236 = vrot.slane %v889, 4
    %v1237 = vsel %vm772, %v1235, %v1236
    %v1238 = vrot.slane %v939, 4
    %v1239 = vsel %vm772, %v1236, %v1238
    %v1240 = vrot.slane %v932, 4
    %v1241 = vrot.slane %v892, 4
    %v1242 = vsel %vm772, %v1240, %v1241
    %v1243 = vrot.slane %v940, 4
    %v1244 = vsel %vm772, %v1241, %v1243
    %v1245 = vrot.slane %v933, 4
    %v1246 = vrot.slane %v895, 4
    %v1247 = vsel %vm772, %v1245, %v1246
    %v1248 = vrot.slane %v941, 4
    %v1249 = vsel %vm772, %v1246, %v1248
    %v1250 = vrot.slane %v934, 4
    %v1251 = vrot.slane %v898, 4
    %v1252 = vsel %vm772, %v1250, %v1251
    %v1253 = vrot.slane %v942, 4
    %v1254 = vsel %vm772, %v1251, %v1253
    %v1255 = vrot.slane %v935, 4
    %v1256 = vrot.slane %v901, 4
    %v1257 = vsel %vm772, %v1255, %v1256
    %v1258 = vrot.slane %v943, 4
    %v1259 = vsel %vm772, %v1256, %v1258
    %v1260 = vrot.slane %v936, 4
    %v1261 = vrot.slane %v904, 4
    %v1262 = vsel %vm772, %v1260, %v1261
    %v1263 = vrot.slane %v944, 4
    %v1264 = vsel %vm772, %v1261, %v1263
    %1265 = vrot.lane.b32.xlu0 %v1227, 64
    %v1266 = vpop.permute.xlu0 %1265
    %1267 = vrot.lane.b32.xlu0 %v1229, 64
    %v1268 = vpop.permute.xlu0 %1267
    %1269 = vrot.lane.b32.xlu0 %v1232, 64
    %v1270 = vpop.permute.xlu0 %1269
    %1271 = vrot.lane.b32.xlu0 %v1234, 64
    %v1272 = vpop.permute.xlu0 %1271
    %1273 = vrot.lane.b32.xlu0 %v1237, 64
    %v1274 = vpop.permute.xlu0 %1273
    %1275 = vrot.lane.b32.xlu0 %v1239, 64
    %v1276 = vpop.permute.xlu0 %1275
    %1277 = vrot.lane.b32.xlu0 %v1242, 64
    %v1278 = vpop.permute.xlu0 %1277
    %1279 = vrot.lane.b32.xlu0 %v1244, 64
    %v1280 = vpop.permute.xlu0 %1279
    %1281 = vrot.lane.b32.xlu0 %v1247, 64
    %v1282 = vpop.permute.xlu0 %1281
    %1283 = vrot.lane.b32.xlu0 %v1249, 64
    %v1284 = vpop.permute.xlu0 %1283
    %1285 = vrot.lane.b32.xlu0 %v1252, 64
    %v1286 = vpop.permute.xlu0 %1285
    %1287 = vrot.lane.b32.xlu0 %v1254, 64
    %v1288 = vpop.permute.xlu0 %1287
    %1289 = vrot.lane.b32.xlu0 %v1257, 64
    %v1290 = vpop.permute.xlu0 %1289
    %1291 = vrot.lane.b32.xlu0 %v1259, 64
    %v1292 = vpop.permute.xlu0 %1291
    %1293 = vrot.lane.b32.xlu0 %v1262, 64
    %v1294 = vpop.permute.xlu0 %1293
    %1295 = vrot.lane.b32.xlu0 %v1264, 64
    %v1296 = vpop.permute.xlu0 %1295
    %vm1313 = vcmask 130048
    %v1314 = vsel %vm1313, %v929, %v1002
    %v1315 = vsel %vm1313, %v883, %v1004
    %v1316 = vsel %vm1313, %v930, %v1006
    %v1317 = vsel %vm1313, %v886, %v1008
    %v1318 = vsel %vm1313, %v931, %v1010
    %v1319 = vsel %vm1313, %v889, %v1012
    %v1320 = vsel %vm1313, %v932, %v1014
    %v1321 = vsel %vm1313, %v892, %v1016
    %v1322 = vsel %vm1313, %v933, %v1018
    %v1323 = vsel %vm1313, %v895, %v1020
    %v1324 = vsel %vm1313, %v934, %v1022
    %v1325 = vsel %vm1313, %v898, %v1024
    %v1326 = vsel %vm1313, %v935, %v1026
    %v1327 = vsel %vm1313, %v901, %v1028
    %v1328 = vsel %vm1313, %v936, %v1030
    %v1329 = vsel %vm1313, %v904, %v1032
    %vm1330 = vcmask 261120
    %v1331 = vsel %vm1330, %v1314, %v1090
    %v1332 = vsel %vm1330, %v1315, %v1092
    %v1333 = vsel %vm1330, %v1316, %v1094
    %v1334 = vsel %vm1330, %v1317, %v1096
    %v1335 = vsel %vm1330, %v1318, %v1098
    %v1336 = vsel %vm1330, %v1319, %v1100
    %v1337 = vsel %vm1330, %v1320, %v1102
    %v1338 = vsel %vm1330, %v1321, %v1104
    %v1339 = vsel %vm1330, %v1322, %v1106
    %v1340 = vsel %vm1330, %v1323, %v1108
    %v1341 = vsel %vm1330, %v1324, %v1110
    %v1342 = vsel %vm1330, %v1325, %v1112
    %v1343 = vsel %vm1330, %v1326, %v1114
    %v1344 = vsel %vm1330, %v1327, %v1116
    %v1345 = vsel %vm1330, %v1328, %v1118
    %v1346 = vsel %vm1330, %v1329, %v1120
    %vm1347 = vcmask 392192
    %v1348 = vsel %vm1347, %v1331, %v1178
    %v1349 = vsel %vm1347, %v1332, %v1180
    %v1350 = vsel %vm1347, %v1333, %v1182
    %v1351 = vsel %vm1347, %v1334, %v1184
    %v1352 = vsel %vm1347, %v1335, %v1186
    %v1353 = vsel %vm1347, %v1336, %v1188
    %v1354 = vsel %vm1347, %v1337, %v1190
    %v1355 = vsel %vm1347, %v1338, %v1192
    %v1356 = vsel %vm1347, %v1339, %v1194
    %v1357 = vsel %vm1347, %v1340, %v1196
    %v1358 = vsel %vm1347, %v1341, %v1198
    %v1359 = vsel %vm1347, %v1342, %v1200
    %v1360 = vsel %vm1347, %v1343, %v1202
    %v1361 = vsel %vm1347, %v1344, %v1204
    %v1362 = vsel %vm1347, %v1345, %v1206
    %v1363 = vsel %vm1347, %v1346, %v1208
    %vm1364 = vcmask 523264
    %v1365 = vsel %vm1364, %v1348, %v1266
    %v1366 = vsel %vm1364, %v1349, %v1268
    %v1367 = vsel %vm1364, %v1350, %v1270
    %v1368 = vsel %vm1364, %v1351, %v1272
    %v1369 = vsel %vm1364, %v1352, %v1274
    %v1370 = vsel %vm1364, %v1353, %v1276
    %v1371 = vsel %vm1364, %v1354, %v1278
    %v1372 = vsel %vm1364, %v1355, %v1280
    %v1373 = vsel %vm1364, %v1356, %v1282
    %v1374 = vsel %vm1364, %v1357, %v1284
    %v1375 = vsel %vm1364, %v1358, %v1286
    %v1376 = vsel %vm1364, %v1359, %v1288
    %v1377 = vsel %vm1364, %v1360, %v1290
    %v1378 = vsel %vm1364, %v1361, %v1292
    %v1379 = vsel %vm1364, %v1362, %v1294
    %v1380 = vsel %vm1364, %v1363, %v1296
    %v1381 = vld [vmem:[%s3] sm:$0xff]
    %v1382 = vld [vmem:[%s3 + $0x8] sm:$0xff]
    %v1383 = vld [vmem:[%s3 + $0x10] sm:$0xff]
    %v1384 = vld [vmem:[%s3 + $0x18] sm:$0xff]
    %v1385 = vld [vmem:[%s3 + $0x20] sm:$0xff]
    %v1386 = vld [vmem:[%s3 + $0x28] sm:$0xff]
    %v1387 = vld [vmem:[%s3 + $0x30] sm:$0xff]
    %v1388 = vld [vmem:[%s3 + $0x38] sm:$0xff]
    %v1389 = vld [vmem:[%s3 + $0x40] sm:$0xff]
    %v1390 = vld [vmem:[%s3 + $0x48] sm:$0xff]
    %vm1391 = vcmask 654336
    %v1393 = vsel %vm1391, %v1365, 0
    %v1396 = vsel %vm1391, %v1366, 0
    %v1399 = vsel %vm1391, %v1367, 0
    %v1402 = vsel %vm1391, %v1368, 0
    %v1405 = vsel %vm1391, %v1369, 0
    %v1408 = vsel %vm1391, %v1370, 0
    %v1411 = vsel %vm1391, %v1371, 0
    %v1414 = vsel %vm1391, %v1372, 0
    %v1417 = vsel %vm1391, %v1373, 0
    %v1420 = vsel %vm1391, %v1374, 0
    %v1423 = vsel %vm1391, %v1375, 0
    %v1426 = vsel %vm1391, %v1376, 0
    %v1429 = vsel %vm1391, %v1377, 0
    %v1432 = vsel %vm1391, %v1378, 0
    %v1435 = vsel %vm1391, %v1379, 0
    %v1438 = vsel %vm1391, %v1380, 0
    %1440 = vmatpush.msra.mxu0 0.0
    %1441 = vmatpush.msra.mxu0 0.0
    %1442 = vmatpush.msra.mxu0 0.0
    %1443 = vmatpush.msra.mxu0 0.0
    %1444 = vmatpush.msra.mxu0 0.0
    %1445 = vmatpush.msra.mxu0 0.0
    %1446 = vmatpush.msra.mxu0 %v1390
    %1447 = vmatpush.msra.mxu0 %v1389
    %1448 = vmatpush.msra.mxu0 %v1388
    %1449 = vmatpush.msra.mxu0 %v1387
    %1450 = vmatpush.msra.mxu0 %v1386
    %1451 = vmatpush.msra.mxu0 %v1385
    %1452 = vmatpush.msra.mxu0 %v1384
    %1453 = vmatpush.msra.mxu0 %v1383
    %1454 = vmatpush.msra.mxu0 %v1382
    %1455 = vmatpush.msra.mxu0 %v1381
    %1456 = vmatmul.f32.gmra.mxu0 %v1393
    %v1457 = vpop.f32.mrf.mxu0
    %v1458 = vadd.f32 0.0, %v1457
    %1459 = vmatmul.f32.gmra.mxu0 %v1396
    %v1460 = vpop.f32.mrf.mxu0
    %v1461 = vadd.f32 0.0, %v1460
    %1462 = vmatmul.f32.gmra.mxu0 %v1399
    %v1463 = vpop.f32.mrf.mxu0
    %v1464 = vadd.f32 0.0, %v1463
    %1465 = vmatmul.f32.gmra.mxu0 %v1402
    %v1466 = vpop.f32.mrf.mxu0
    %v1467 = vadd.f32 0.0, %v1466
    %1468 = vmatmul.f32.gmra.mxu0 %v1405
    %v1469 = vpop.f32.mrf.mxu0
    %v1470 = vadd.f32 0.0, %v1469
    %1471 = vmatmul.f32.gmra.mxu0 %v1408
    %v1472 = vpop.f32.mrf.mxu0
    %v1473 = vadd.f32 0.0, %v1472
    %1474 = vmatmul.f32.gmra.mxu0 %v1411
    %v1475 = vpop.f32.mrf.mxu0
    %v1476 = vadd.f32 0.0, %v1475
    %1477 = vmatmul.f32.gmra.mxu0 %v1414
    %v1478 = vpop.f32.mrf.mxu0
    %v1479 = vadd.f32 0.0, %v1478
    %1480 = vmatmul.f32.gmra.mxu0 %v1417
    %v1481 = vpop.f32.mrf.mxu0
    %v1482 = vadd.f32 0.0, %v1481
    %1483 = vmatmul.f32.gmra.mxu0 %v1420
    %v1484 = vpop.f32.mrf.mxu0
    %v1485 = vadd.f32 0.0, %v1484
    %1486 = vmatmul.f32.gmra.mxu0 %v1423
    %v1487 = vpop.f32.mrf.mxu0
    %v1488 = vadd.f32 0.0, %v1487
    %1489 = vmatmul.f32.gmra.mxu0 %v1426
    %v1490 = vpop.f32.mrf.mxu0
    %v1491 = vadd.f32 0.0, %v1490
    %1492 = vmatmul.f32.gmra.mxu0 %v1429
    %v1493 = vpop.f32.mrf.mxu0
    %v1494 = vadd.f32 0.0, %v1493
    %1495 = vmatmul.f32.gmra.mxu0 %v1432
    %v1496 = vpop.f32.mrf.mxu0
    %v1497 = vadd.f32 0.0, %v1496
    %1498 = vmatmul.f32.gmra.mxu0 %v1435
    %v1499 = vpop.f32.mrf.mxu0
    %v1500 = vadd.f32 0.0, %v1499
    %1501 = vmatmul.f32.gmra.mxu0 %v1438
    %v1502 = vpop.f32.mrf.mxu0
    %v1503 = vadd.f32 0.0, %v1502
    %1504 = vdwg.mxu0
    %v1505 = vld [vmem:[%s4] sm:$0x1]
    %v1507 = vperm.slane %v1505, 0
    %v1509 = vadd.f32 %v1458, %v1507
    %v1510 = vadd.f32 %v1461, %v1507
    %v1511 = vadd.f32 %v1464, %v1507
    %v1512 = vadd.f32 %v1467, %v1507
    %v1513 = vadd.f32 %v1470, %v1507
    %v1514 = vadd.f32 %v1473, %v1507
    %v1515 = vadd.f32 %v1476, %v1507
    %v1516 = vadd.f32 %v1479, %v1507
    %v1517 = vadd.f32 %v1482, %v1507
    %v1518 = vadd.f32 %v1485, %v1507
    %v1519 = vadd.f32 %v1488, %v1507
    %v1520 = vadd.f32 %v1491, %v1507
    %v1521 = vadd.f32 %v1494, %v1507
    %v1522 = vadd.f32 %v1497, %v1507
    %v1523 = vadd.f32 %v1500, %v1507
    %v1524 = vadd.f32 %v1503, %v1507
    %v1525 = vmax.f32 %v1509, 0.0
    %v1526 = vmax.f32 %v1510, 0.0
    %v1527 = vmax.f32 %v1511, 0.0
    %v1528 = vmax.f32 %v1512, 0.0
    %v1529 = vmax.f32 %v1513, 0.0
    %v1530 = vmax.f32 %v1514, 0.0
    %v1531 = vmax.f32 %v1515, 0.0
    %v1532 = vmax.f32 %v1516, 0.0
    %v1533 = vmax.f32 %v1517, 0.0
    %v1534 = vmax.f32 %v1518, 0.0
    %v1535 = vmax.f32 %v1519, 0.0
    %v1536 = vmax.f32 %v1520, 0.0
    %v1537 = vmax.f32 %v1521, 0.0
    %v1538 = vmax.f32 %v1522, 0.0
    %v1539 = vmax.f32 %v1523, 0.0
    %v1540 = vmax.f32 %v1524, 0.0
    %1541 = vst.msk [vmem:[#allocation2] sm:$0xff] %vm1313, %v1525
    %1542 = vst.msk [vmem:[#allocation2 + $0x8] sm:$0xff] %vm1313, %v1526
    %1543 = vst.msk [vmem:[#allocation2 + $0x10] sm:$0xff] %vm1313, %v1527
    %1544 = vst.msk [vmem:[#allocation2 + $0x18] sm:$0xff] %vm1313, %v1528
    %1545 = vst.msk [vmem:[#allocation2 + $0x20] sm:$0xff] %vm1313, %v1529
    %1546 = vst.msk [vmem:[#allocation2 + $0x28] sm:$0xff] %vm1313, %v1530
    %1547 = vst.msk [vmem:[#allocation2 + $0x30] sm:$0xff] %vm1313, %v1531
    %1548 = vst.msk [vmem:[#allocation2 + $0x38] sm:$0xff] %vm1313, %v1532
    %1549 = vst.msk [vmem:[#allocation2 + $0x40] sm:$0xff] %vm1313, %v1533
    %1550 = vst.msk [vmem:[#allocation2 + $0x48] sm:$0xff] %vm1313, %v1534
    %1551 = vst.msk [vmem:[#allocation2 + $0x50] sm:$0xff] %vm1313, %v1535
    %1552 = vst.msk [vmem:[#allocation2 + $0x58] sm:$0xff] %vm1313, %v1536
    %1553 = vst.msk [vmem:[#allocation2 + $0x60] sm:$0xff] %vm1313, %v1537
    %1554 = vst.msk [vmem:[#allocation2 + $0x68] sm:$0xff] %vm1313, %v1538
    %1555 = vst.msk [vmem:[#allocation2 + $0x70] sm:$0xff] %vm1313, %v1539
    %1556 = vst.msk [vmem:[#allocation2 + $0x78] sm:$0xff] %vm1313, %v1540
    %v1557 = vld [vmem:[#allocation2] ss:$2 sm:$0x7f]
    %s1558 = scalar_lea.vmem [#allocation2], 16
    %v1559 = vld [vmem:[%s1558] ss:$2 sm:$0x7f]
    %s1560 = scalar_lea.vmem [#allocation2], 32
    %v1561 = vld [vmem:[%s1560] ss:$2 sm:$0x7f]
    %s1562 = scalar_lea.vmem [#allocation2], 48
    %v1563 = vld [vmem:[%s1562] ss:$2 sm:$0x7f]
    %s1564 = scalar_lea.vmem [#allocation2], 64
    %v1565 = vld [vmem:[%s1564] ss:$2 sm:$0x7f]
    %s1566 = scalar_lea.vmem [#allocation2], 80
    %v1567 = vld [vmem:[%s1566] ss:$2 sm:$0x7f]
    %s1568 = scalar_lea.vmem [#allocation2], 96
    %v1569 = vld [vmem:[%s1568] ss:$2 sm:$0x7f]
    %s1570 = scalar_lea.vmem [#allocation2], 112
    %v1571 = vld [vmem:[%s1570] ss:$2 sm:$0x7f]
    %s1572 = scalar_lea.vmem [#allocation2], 1
    %v1573 = vld [vmem:[%s1572] ss:$2 sm:$0x7f]
    %s1574 = scalar_lea.vmem [#allocation2], 17
    %v1575 = vld [vmem:[%s1574] ss:$2 sm:$0x7f]
    %s1576 = scalar_lea.vmem [#allocation2], 33
    %v1577 = vld [vmem:[%s1576] ss:$2 sm:$0x7f]
    %s1578 = scalar_lea.vmem [#allocation2], 49
    %v1579 = vld [vmem:[%s1578] ss:$2 sm:$0x7f]
    %s1580 = scalar_lea.vmem [#allocation2], 65
    %v1581 = vld [vmem:[%s1580] ss:$2 sm:$0x7f]
    %s1582 = scalar_lea.vmem [#allocation2], 81
    %v1583 = vld [vmem:[%s1582] ss:$2 sm:$0x7f]
    %s1584 = scalar_lea.vmem [#allocation2], 97
    %v1585 = vld [vmem:[%s1584] ss:$2 sm:$0x7f]
    %s1586 = scalar_lea.vmem [#allocation2], 113
    %v1587 = vld [vmem:[%s1586] ss:$2 sm:$0x7f]
    %s1588 = scalar_lea.vmem [#allocation2], 2
    %v1589 = vld [vmem:[%s1588] ss:$2 sm:$0x7f]
    %s1590 = scalar_lea.vmem [#allocation2], 18
    %v1591 = vld [vmem:[%s1590] ss:$2 sm:$0x7f]
    %s1592 = scalar_lea.vmem [#allocation2], 34
    %v1593 = vld [vmem:[%s1592] ss:$2 sm:$0x7f]
    %s1594 = scalar_lea.vmem [#allocation2], 50
    %v1595 = vld [vmem:[%s1594] ss:$2 sm:$0x7f]
    %s1596 = scalar_lea.vmem [#allocation2], 66
    %v1597 = vld [vmem:[%s1596] ss:$2 sm:$0x7f]
    %s1598 = scalar_lea.vmem [#allocation2], 82
    %v1599 = vld [vmem:[%s1598] ss:$2 sm:$0x7f]
    %s1600 = scalar_lea.vmem [#allocation2], 98
    %v1601 = vld [vmem:[%s1600] ss:$2 sm:$0x7f]
    %s1602 = scalar_lea.vmem [#allocation2], 114
    %v1603 = vld [vmem:[%s1602] ss:$2 sm:$0x7f]
    %v1604 = vmax.f32 %v1557, %v1573
    %v1605 = vmax.f32 %v1559, %v1575
    %v1606 = vmax.f32 %v1561, %v1577
    %v1607 = vmax.f32 %v1563, %v1579
    %v1608 = vmax.f32 %v1565, %v1581
    %v1609 = vmax.f32 %v1567, %v1583
    %v1610 = vmax.f32 %v1569, %v1585
    %v1611 = vmax.f32 %v1571, %v1587
    %v1612 = vmax.f32 %v1604, %v1589
    %v1613 = vmax.f32 %v1605, %v1591
    %v1614 = vmax.f32 %v1606, %v1593
    %v1615 = vmax.f32 %v1607, %v1595
    %v1616 = vmax.f32 %v1608, %v1597
    %v1617 = vmax.f32 %v1609, %v1599
    %v1618 = vmax.f32 %v1610, %v1601
    %v1619 = vmax.f32 %v1611, %v1603
    %v1628 = vrot.slane %v1612, 6
    %v1629 = vrot.slane %v1613, 6
    %v1630 = vrot.slane %v1614, 6
    %v1631 = vrot.slane %v1615, 6
    %v1632 = vrot.slane %v1616, 6
    %v1633 = vrot.slane %v1617, 6
    %v1634 = vrot.slane %v1618, 6
    %v1635 = vrot.slane %v1619, 6
    %v1644 = vsel %vm154, 0.0, %v1628
    %v1645 = vsel %vm154, 0.0, %v1629
    %v1646 = vsel %vm154, 0.0, %v1630
    %v1647 = vsel %vm154, 0.0, %v1631
    %v1648 = vsel %vm154, 0.0, %v1632
    %v1649 = vsel %vm154, 0.0, %v1633
    %v1650 = vsel %vm154, 0.0, %v1634
    %v1651 = vsel %vm154, 0.0, %v1635
    %vm1652 = vcmask 1040384
    %v1653 = vsel %vm1652, %v1628, 0.0
    %v1654 = vsel %vm1652, %v1629, 0.0
    %v1655 = vsel %vm1652, %v1630, 0.0
    %v1656 = vsel %vm1652, %v1631, 0.0
    %v1657 = vsel %vm1652, %v1632, 0.0
    %v1658 = vsel %vm1652, %v1633, 0.0
    %v1659 = vsel %vm1652, %v1634, 0.0
    %v1660 = vsel %vm1652, %v1635, 0.0
    %v1669 = vrot.slane %v1644, 1
    %v1670 = vrot.slane %v1645, 1
    %v1671 = vrot.slane %v1646, 1
    %v1672 = vrot.slane %v1647, 1
    %v1673 = vrot.slane %v1648, 1
    %v1674 = vrot.slane %v1649, 1
    %v1675 = vrot.slane %v1650, 1
    %v1676 = vrot.slane %v1651, 1
    %1677 = vrot.lane.b32.xlu0 %v1669, 16
    %v1678 = vpop.permute.xlu0 %1677
    %1679 = vrot.lane.b32.xlu0 %v1670, 16
    %v1680 = vpop.permute.xlu0 %1679
    %1681 = vrot.lane.b32.xlu0 %v1671, 16
    %v1682 = vpop.permute.xlu0 %1681
    %1683 = vrot.lane.b32.xlu0 %v1672, 16
    %v1684 = vpop.permute.xlu0 %1683
    %1685 = vrot.lane.b32.xlu0 %v1673, 16
    %v1686 = vpop.permute.xlu0 %1685
    %1687 = vrot.lane.b32.xlu0 %v1674, 16
    %v1688 = vpop.permute.xlu0 %1687
    %1689 = vrot.lane.b32.xlu0 %v1675, 16
    %v1690 = vpop.permute.xlu0 %1689
    %1691 = vrot.lane.b32.xlu0 %v1676, 16
    %v1692 = vpop.permute.xlu0 %1691
    %v1709 = vrot.slane %v1644, 2
    %v1710 = vrot.slane %v1653, 2
    %v1711 = vsel %vm528, %v1709, %v1710
    %v1712 = vrot.slane %v1645, 2
    %v1713 = vrot.slane %v1654, 2
    %v1714 = vsel %vm528, %v1712, %v1713
    %v1715 = vrot.slane %v1646, 2
    %v1716 = vrot.slane %v1655, 2
    %v1717 = vsel %vm528, %v1715, %v1716
    %v1718 = vrot.slane %v1647, 2
    %v1719 = vrot.slane %v1656, 2
    %v1720 = vsel %vm528, %v1718, %v1719
    %v1721 = vrot.slane %v1648, 2
    %v1722 = vrot.slane %v1657, 2
    %v1723 = vsel %vm528, %v1721, %v1722
    %v1724 = vrot.slane %v1649, 2
    %v1725 = vrot.slane %v1658, 2
    %v1726 = vsel %vm528, %v1724, %v1725
    %v1727 = vrot.slane %v1650, 2
    %v1728 = vrot.slane %v1659, 2
    %v1729 = vsel %vm528, %v1727, %v1728
    %v1730 = vrot.slane %v1651, 2
    %v1731 = vrot.slane %v1660, 2
    %v1732 = vsel %vm528, %v1730, %v1731
    %1733 = vrot.lane.b32.xlu0 %v1711, 32
    %v1734 = vpop.permute.xlu0 %1733
    %1735 = vrot.lane.b32.xlu0 %v1714, 32
    %v1736 = vpop.permute.xlu0 %1735
    %1737 = vrot.lane.b32.xlu0 %v1717, 32
    %v1738 = vpop.permute.xlu0 %1737
    %1739 = vrot.lane.b32.xlu0 %v1720, 32
    %v1740 = vpop.permute.xlu0 %1739
    %1741 = vrot.lane.b32.xlu0 %v1723, 32
    %v1742 = vpop.permute.xlu0 %1741
    %1743 = vrot.lane.b32.xlu0 %v1726, 32
    %v1744 = vpop.permute.xlu0 %1743
    %1745 = vrot.lane.b32.xlu0 %v1729, 32
    %v1746 = vpop.permute.xlu0 %1745
    %1747 = vrot.lane.b32.xlu0 %v1732, 32
    %v1748 = vpop.permute.xlu0 %1747
    %v1757 = vrot.slane %v1644, 3
    %v1758 = vrot.slane %v1653, 3
    %v1759 = vsel %vm650, %v1757, %v1758
    %v1760 = vrot.slane %v1645, 3
    %v1761 = vrot.slane %v1654, 3
    %v1762 = vsel %vm650, %v1760, %v1761
    %v1763 = vrot.slane %v1646, 3
    %v1764 = vrot.slane %v1655, 3
    %v1765 = vsel %vm650, %v1763, %v1764
    %v1766 = vrot.slane %v1647, 3
    %v1767 = vrot.slane %v1656, 3
    %v1768 = vsel %vm650, %v1766, %v1767
    %v1769 = vrot.slane %v1648, 3
    %v1770 = vrot.slane %v1657, 3
    %v1771 = vsel %vm650, %v1769, %v1770
    %v1772 = vrot.slane %v1649, 3
    %v1773 = vrot.slane %v1658, 3
    %v1774 = vsel %vm650, %v1772, %v1773
    %v1775 = vrot.slane %v1650, 3
    %v1776 = vrot.slane %v1659, 3
    %v1777 = vsel %vm650, %v1775, %v1776
    %v1778 = vrot.slane %v1651, 3
    %v1779 = vrot.slane %v1660, 3
    %v1780 = vsel %vm650, %v1778, %v1779
    %1781 = vrot.lane.b32.xlu0 %v1759, 48
    %v1782 = vpop.permute.xlu0 %1781
    %1783 = vrot.lane.b32.xlu0 %v1762, 48
    %v1784 = vpop.permute.xlu0 %1783
    %1785 = vrot.lane.b32.xlu0 %v1765, 48
    %v1786 = vpop.permute.xlu0 %1785
    %1787 = vrot.lane.b32.xlu0 %v1768, 48
    %v1788 = vpop.permute.xlu0 %1787
    %1789 = vrot.lane.b32.xlu0 %v1771, 48
    %v1790 = vpop.permute.xlu0 %1789
    %1791 = vrot.lane.b32.xlu0 %v1774, 48
    %v1792 = vpop.permute.xlu0 %1791
    %1793 = vrot.lane.b32.xlu0 %v1777, 48
    %v1794 = vpop.permute.xlu0 %1793
    %1795 = vrot.lane.b32.xlu0 %v1780, 48
    %v1796 = vpop.permute.xlu0 %1795
    %v1805 = vrot.slane %v1644, 4
    %v1806 = vrot.slane %v1653, 4
    %v1807 = vsel %vm772, %v1805, %v1806
    %v1808 = vrot.slane %v1645, 4
    %v1809 = vrot.slane %v1654, 4
    %v1810 = vsel %vm772, %v1808, %v1809
    %v1811 = vrot.slane %v1646, 4
    %v1812 = vrot.slane %v1655, 4
    %v1813 = vsel %vm772, %v1811, %v1812
    %v1814 = vrot.slane %v1647, 4
    %v1815 = vrot.slane %v1656, 4
    %v1816 = vsel %vm772, %v1814, %v1815
    %v1817 = vrot.slane %v1648, 4
    %v1818 = vrot.slane %v1657, 4
    %v1819 = vsel %vm772, %v1817, %v1818
    %v1820 = vrot.slane %v1649, 4
    %v1821 = vrot.slane %v1658, 4
    %v1822 = vsel %vm772, %v1820, %v1821
    %v1823 = vrot.slane %v1650, 4
    %v1824 = vrot.slane %v1659, 4
    %v1825 = vsel %vm772, %v1823, %v1824
    %v1826 = vrot.slane %v1651, 4
    %v1827 = vrot.slane %v1660, 4
    %v1828 = vsel %vm772, %v1826, %v1827
    %1829 = vrot.lane.b32.xlu0 %v1807, 64
    %v1830 = vpop.permute.xlu0 %1829
    %1831 = vrot.lane.b32.xlu0 %v1810, 64
    %v1832 = vpop.permute.xlu0 %1831
    %1833 = vrot.lane.b32.xlu0 %v1813, 64
    %v1834 = vpop.permute.xlu0 %1833
    %1835 = vrot.lane.b32.xlu0 %v1816, 64
    %v1836 = vpop.permute.xlu0 %1835
    %1837 = vrot.lane.b32.xlu0 %v1819, 64
    %v1838 = vpop.permute.xlu0 %1837
    %1839 = vrot.lane.b32.xlu0 %v1822, 64
    %v1840 = vpop.permute.xlu0 %1839
    %1841 = vrot.lane.b32.xlu0 %v1825, 64
    %v1842 = vpop.permute.xlu0 %1841
    %1843 = vrot.lane.b32.xlu0 %v1828, 64
    %v1844 = vpop.permute.xlu0 %1843
    %v1853 = vsel %vm1313, %v1644, %v1678
    %v1854 = vsel %vm1313, %v1645, %v1680
    %v1855 = vsel %vm1313, %v1646, %v1682
    %v1856 = vsel %vm1313, %v1647, %v1684
    %v1857 = vsel %vm1313, %v1648, %v1686
    %v1858 = vsel %vm1313, %v1649, %v1688
    %v1859 = vsel %vm1313, %v1650, %v1690
    %v1860 = vsel %vm1313, %v1651, %v1692
    %v1861 = vsel %vm1330, %v1853, %v1734
    %v1862 = vsel %vm1330, %v1854, %v1736
    %v1863 = vsel %vm1330, %v1855, %v1738
    %v1864 = vsel %vm1330, %v1856, %v1740
    %v1865 = vsel %vm1330, %v1857, %v1742
    %v1866 = vsel %vm1330, %v1858, %v1744
    %v1867 = vsel %vm1330, %v1859, %v1746
    %v1868 = vsel %vm1330, %v1860, %v1748
    %v1869 = vsel %vm1347, %v1861, %v1782
    %v1870 = vsel %vm1347, %v1862, %v1784
    %v1871 = vsel %vm1347, %v1863, %v1786
    %v1872 = vsel %vm1347, %v1864, %v1788
    %v1873 = vsel %vm1347, %v1865, %v1790
    %v1874 = vsel %vm1347, %v1866, %v1792
    %v1875 = vsel %vm1347, %v1867, %v1794
    %v1876 = vsel %vm1347, %v1868, %v1796
    %v1877 = vsel %vm1364, %v1869, %v1830
    %v1878 = vsel %vm1364, %v1870, %v1832
    %v1879 = vsel %vm1364, %v1871, %v1834
    %v1880 = vsel %vm1364, %v1872, %v1836
    %v1881 = vsel %vm1364, %v1873, %v1838
    %v1882 = vsel %vm1364, %v1874, %v1840
    %v1883 = vsel %vm1364, %v1875, %v1842
    %v1884 = vsel %vm1364, %v1876, %v1844
    %v1893 = vrot.slane %v1877, 1
    %v1894 = vrot.slane %v1877, 2
    %v1895 = vrot.slane %v1877, 3
    %v1896 = vrot.slane %v1877, 4
    %v1897 = vrot.slane %v1877, 5
    %v1898 = vrot.slane %v1877, 6
    %v1899 = vrot.slane %v1878, 1
    %v1900 = vrot.slane %v1878, 2
    %v1901 = vrot.slane %v1878, 3
    %v1902 = vrot.slane %v1878, 4
    %v1903 = vrot.slane %v1878, 5
    %v1904 = vrot.slane %v1878, 6
    %v1905 = vrot.slane %v1879, 1
    %v1906 = vrot.slane %v1879, 2
    %v1907 = vrot.slane %v1879, 3
    %v1908 = vrot.slane %v1879, 4
    %v1909 = vrot.slane %v1879, 5
    %v1910 = vrot.slane %v1879, 6
    %v1911 = vrot.slane %v1880, 1
    %v1912 = vrot.slane %v1880, 2
    %v1913 = vrot.slane %v1880, 3
    %v1914 = vrot.slane %v1880, 4
    %v1915 = vrot.slane %v1880, 5
    %v1916 = vrot.slane %v1880, 6
    %v1917 = vrot.slane %v1881, 1
    %v1918 = vrot.slane %v1881, 2
    %v1919 = vrot.slane %v1881, 3
    %v1920 = vrot.slane %v1881, 4
    %v1921 = vrot.slane %v1881, 5
    %v1922 = vrot.slane %v1881, 6
    %v1923 = vrot.slane %v1882, 1
    %v1924 = vrot.slane %v1882, 2
    %v1925 = vrot.slane %v1882, 3
    %v1926 = vrot.slane %v1882, 4
    %v1927 = vrot.slane %v1882, 5
    %v1928 = vrot.slane %v1882, 6
    %v1929 = vrot.slane %v1883, 1
    %v1930 = vrot.slane %v1883, 2
    %v1931 = vrot.slane %v1883, 3
    %v1932 = vrot.slane %v1883, 4
    %v1933 = vrot.slane %v1883, 5
    %v1934 = vrot.slane %v1883, 6
    %v1935 = vrot.slane %v1884, 1
    %v1936 = vrot.slane %v1884, 2
    %v1937 = vrot.slane %v1884, 3
    %v1938 = vrot.slane %v1884, 4
    %v1939 = vrot.slane %v1884, 5
    %v1940 = vrot.slane %v1884, 6
    %v1941 = vld [vmem:[%s5] sm:$0xff]
    %v1942 = vld [vmem:[%s5 + $0x8] sm:$0xff]
    %v1943 = vld [vmem:[%s5 + $0x10] sm:$0xff]
    %v1944 = vld [vmem:[%s5 + $0x18] sm:$0xff]
    %v1945 = vld [vmem:[%s5 + $0x20] sm:$0xff]
    %v1946 = vld [vmem:[%s5 + $0x28] sm:$0xff]
    %v1947 = vld [vmem:[%s5 + $0x30] sm:$0xff]
    %v1948 = vld [vmem:[%s5 + $0x38] sm:$0xff]
    %v1949 = vld [vmem:[%s5 + $0x40] sm:$0xff]
    %v1950 = vld [vmem:[%s5 + $0x48] sm:$0xff]
    %1951 = vst [vmem:[#allocation1] ss:$9 sm:$0xff] %v1877
    %s1952 = scalar_lea.vmem [#allocation1], 1
    %1953 = vst [vmem:[%s1952] ss:$9 sm:$0xff] %v1893
    %s1954 = scalar_lea.vmem [#allocation1], 2
    %1955 = vst [vmem:[%s1954] ss:$9 sm:$0xff] %v1894
    %s1956 = scalar_lea.vmem [#allocation1], 3
    %1957 = vst [vmem:[%s1956] ss:$9 sm:$0xff] %v1895
    %s1958 = scalar_lea.vmem [#allocation1], 4
    %1959 = vst [vmem:[%s1958] ss:$9 sm:$0xff] %v1896
    %s1960 = scalar_lea.vmem [#allocation1], 5
    %1961 = vst [vmem:[%s1960] ss:$9 sm:$0xff] %v1897
    %s1962 = scalar_lea.vmem [#allocation1], 6
    %1963 = vst [vmem:[%s1962] ss:$9 sm:$0xff] %v1898
    %s1964 = scalar_lea.vmem [#allocation1], 7
    %1965 = vst [vmem:[%s1964] ss:$9 sm:$0xff] %v1878
    %v1966 = vld [vmem:[#allocation1] sm:$0xff]
    %1967 = vst [vmem:[#allocation1] ss:$9 sm:$0xff] %v1899
    %1968 = vst [vmem:[%s1952] ss:$9 sm:$0xff] %v1900
    %1969 = vst [vmem:[%s1954] ss:$9 sm:$0xff] %v1901
    %1970 = vst [vmem:[%s1956] ss:$9 sm:$0xff] %v1902
    %1971 = vst [vmem:[%s1958] ss:$9 sm:$0xff] %v1903
    %1972 = vst [vmem:[%s1960] ss:$9 sm:$0xff] %v1904
    %1973 = vst [vmem:[%s1962] ss:$9 sm:$0xff] %v1879
    %1974 = vst [vmem:[%s1964] ss:$9 sm:$0xff] %v1905
    %v1975 = vld [vmem:[#allocation1] sm:$0xff]
    %1976 = vst [vmem:[#allocation1] ss:$9 sm:$0xff] %v1906
    %1977 = vst [vmem:[%s1952] ss:$9 sm:$0xff] %v1907
    %1978 = vst [vmem:[%s1954] ss:$9 sm:$0xff] %v1908
    %1979 = vst [vmem:[%s1956] ss:$9 sm:$0xff] %v1909
    %1980 = vst [vmem:[%s1958] ss:$9 sm:$0xff] %v1910
    %1981 = vst [vmem:[%s1960] ss:$9 sm:$0xff] %v1880
    %1982 = vst [vmem:[%s1962] ss:$9 sm:$0xff] %v1911
    %1983 = vst [vmem:[%s1964] ss:$9 sm:$0xff] %v1912
    %v1984 = vld [vmem:[#allocation1] sm:$0xff]
    %1985 = vst [vmem:[#allocation1] ss:$9 sm:$0xff] %v1913
    %1986 = vst [vmem:[%s1952] ss:$9 sm:$0xff] %v1914
    %1987 = vst [vmem:[%s1954] ss:$9 sm:$0xff] %v1915
    %1988 = vst [vmem:[%s1956] ss:$9 sm:$0xff] %v1916
    %1989 = vst [vmem:[%s1958] ss:$9 sm:$0xff] %v1881
    %1990 = vst [vmem:[%s1960] ss:$9 sm:$0xff] %v1917
    %1991 = vst [vmem:[%s1962] ss:$9 sm:$0xff] %v1918
    %1992 = vst [vmem:[%s1964] ss:$9 sm:$0xff] %v1919
    %v1993 = vld [vmem:[#allocation1] sm:$0xff]
    %1994 = vst [vmem:[#allocation1] ss:$9 sm:$0xff] %v1920
    %1995 = vst [vmem:[%s1952] ss:$9 sm:$0xff] %v1921
    %1996 = vst [vmem:[%s1954] ss:$9 sm:$0xff] %v1922
    %1997 = vst [vmem:[%s1956] ss:$9 sm:$0xff] %v1882
    %1998 = vst [vmem:[%s1958] ss:$9 sm:$0xff] %v1923
    %1999 = vst [vmem:[%s1960] ss:$9 sm:$0xff] %v1924
    %2000 = vst [vmem:[%s1962] ss:$9 sm:$0xff] %v1925
    %2001 = vst [vmem:[%s1964] ss:$9 sm:$0xff] %v1926
    %v2002 = vld [vmem:[#allocation1] sm:$0xff]
    %2003 = vst [vmem:[#allocation1] ss:$9 sm:$0xff] %v1927
    %2004 = vst [vmem:[%s1952] ss:$9 sm:$0xff] %v1928
    %2005 = vst [vmem:[%s1954] ss:$9 sm:$0xff] %v1883
    %2006 = vst [vmem:[%s1956] ss:$9 sm:$0xff] %v1929
    %2007 = vst [vmem:[%s1958] ss:$9 sm:$0xff] %v1930
    %2008 = vst [vmem:[%s1960] ss:$9 sm:$0xff] %v1931
    %2009 = vst [vmem:[%s1962] ss:$9 sm:$0xff] %v1932
    %2010 = vst [vmem:[%s1964] ss:$9 sm:$0xff] %v1933
    %v2011 = vld [vmem:[#allocation1] sm:$0xff]
    %2012 = vst [vmem:[#allocation1] ss:$9 sm:$0xff] %v1934
    %2013 = vst [vmem:[%s1952] ss:$9 sm:$0xff] %v1884
    %2014 = vst [vmem:[%s1954] ss:$9 sm:$0xff] %v1935
    %2015 = vst [vmem:[%s1956] ss:$9 sm:$0xff] %v1936
    %2016 = vst [vmem:[%s1958] ss:$9 sm:$0xff] %v1937
    %2017 = vst [vmem:[%s1960] ss:$9 sm:$0xff] %v1938
    %2018 = vst [vmem:[%s1962] ss:$9 sm:$0xff] %v1939
    %2019 = vst [vmem:[%s1964] ss:$9 sm:$0xff] %v1940
    %v2020 = vld [vmem:[#allocation1] sm:$0xff]
    %v2021 = vsel %vm1391, %v1966, 0
    %v2023 = vsel %vm1391, %v1975, 0
    %v2025 = vsel %vm1391, %v1984, 0
    %v2027 = vsel %vm1391, %v1993, 0
    %v2029 = vsel %vm1391, %v2002, 0
    %v2031 = vsel %vm1391, %v2011, 0
    %v2033 = vsel %vm1391, %v2020, 0
    %2035 = vmatpush.msra.mxu0 0.0
    %2036 = vmatpush.msra.mxu0 0.0
    %2037 = vmatpush.msra.mxu0 0.0
    %2038 = vmatpush.msra.mxu0 0.0
    %2039 = vmatpush.msra.mxu0 0.0
    %2040 = vmatpush.msra.mxu0 0.0
    %2041 = vmatpush.msra.mxu0 %v1950
    %2042 = vmatpush.msra.mxu0 %v1949
    %2043 = vmatpush.msra.mxu0 %v1948
    %2044 = vmatpush.msra.mxu0 %v1947
    %2045 = vmatpush.msra.mxu0 %v1946
    %2046 = vmatpush.msra.mxu0 %v1945
    %2047 = vmatpush.msra.mxu0 %v1944
    %2048 = vmatpush.msra.mxu0 %v1943
    %2049 = vmatpush.msra.mxu0 %v1942
    %2050 = vmatpush.msra.mxu0 %v1941
    %2051 = vmatmul.f32.gmra.mxu0 %v2021
    %v2052 = vpop.f32.mrf.mxu0
    %v2053 = vadd.f32 0.0, %v2052
    %2054 = vmatmul.f32.gmra.mxu0 %v2023
    %v2055 = vpop.f32.mrf.mxu0
    %v2056 = vadd.f32 0.0, %v2055
    %2057 = vmatmul.f32.gmra.mxu0 %v2025
    %v2058 = vpop.f32.mrf.mxu0
    %v2059 = vadd.f32 0.0, %v2058
    %2060 = vmatmul.f32.gmra.mxu0 %v2027
    %v2061 = vpop.f32.mrf.mxu0
    %v2062 = vadd.f32 0.0, %v2061
    %2063 = vmatmul.f32.gmra.mxu0 %v2029
    %v2064 = vpop.f32.mrf.mxu0
    %v2065 = vadd.f32 0.0, %v2064
    %2066 = vmatmul.f32.gmra.mxu0 %v2031
    %v2067 = vpop.f32.mrf.mxu0
    %v2068 = vadd.f32 0.0, %v2067
    %2069 = vmatmul.f32.gmra.mxu0 %v2033
    %v2070 = vpop.f32.mrf.mxu0
    %v2071 = vadd.f32 0.0, %v2070
    %2072 = vdwg.mxu0
    %v2080 = vrot.slane %v2053, 1
    %v2081 = vrot.slane %v2053, 2
    %v2082 = vrot.slane %v2053, 3
    %v2083 = vrot.slane %v2053, 4
    %v2084 = vrot.slane %v2053, 5
    %v2085 = vrot.slane %v2053, 6
    %v2086 = vrot.slane %v2053, 7
    %v2087 = vrot.slane %v2056, 1
    %v2088 = vrot.slane %v2056, 2
    %v2089 = vrot.slane %v2056, 3
    %v2090 = vrot.slane %v2056, 4
    %v2091 = vrot.slane %v2056, 5
    %v2092 = vrot.slane %v2056, 6
    %v2093 = vrot.slane %v2056, 7
    %v2094 = vrot.slane %v2059, 1
    %v2095 = vrot.slane %v2059, 2
    %v2096 = vrot.slane %v2059, 3
    %v2097 = vrot.slane %v2059, 4
    %v2098 = vrot.slane %v2059, 5
    %v2099 = vrot.slane %v2059, 6
    %v2100 = vrot.slane %v2059, 7
    %v2101 = vrot.slane %v2062, 1
    %v2102 = vrot.slane %v2062, 2
    %v2103 = vrot.slane %v2062, 3
    %v2104 = vrot.slane %v2062, 4
    %v2105 = vrot.slane %v2062, 5
    %v2106 = vrot.slane %v2062, 6
    %v2107 = vrot.slane %v2062, 7
    %v2108 = vrot.slane %v2065, 1
    %v2109 = vrot.slane %v2065, 2
    %v2110 = vrot.slane %v2065, 3
    %v2111 = vrot.slane %v2065, 4
    %v2112 = vrot.slane %v2065, 5
    %v2113 = vrot.slane %v2065, 6
    %v2114 = vrot.slane %v2065, 7
    %v2115 = vrot.slane %v2068, 1
    %v2116 = vrot.slane %v2068, 2
    %v2117 = vrot.slane %v2068, 3
    %v2118 = vrot.slane %v2068, 4
    %v2119 = vrot.slane %v2068, 5
    %v2120 = vrot.slane %v2068, 6
    %v2121 = vrot.slane %v2068, 7
    %v2122 = vrot.slane %v2071, 1
    %v2123 = vrot.slane %v2071, 2
    %v2124 = vrot.slane %v2071, 3
    %v2125 = vrot.slane %v2071, 4
    %v2126 = vrot.slane %v2071, 5
    %v2127 = vrot.slane %v2071, 6
    %v2128 = vrot.slane %v2071, 7
    %v2178 = vld [vmem:[%s6] sm:$0x1]
    %v2180 = vperm.slane %v2178, 0
    %v2182 = vrot.slane %v2180, 1
    %v2183 = vrot.slane %v2180, 2
    %v2184 = vrot.slane %v2180, 3
    %v2185 = vrot.slane %v2180, 4
    %v2186 = vrot.slane %v2180, 5
    %v2187 = vrot.slane %v2180, 6
    %v2194 = vadd.f32 %v2053, %v2180
    %v2195 = vadd.f32 %v2080, %v2182
    %v2196 = vadd.f32 %v2081, %v2183
    %v2197 = vadd.f32 %v2082, %v2184
    %v2198 = vadd.f32 %v2083, %v2185
    %v2199 = vadd.f32 %v2084, %v2186
    %v2200 = vadd.f32 %v2085, %v2187
    %v2201 = vadd.f32 %v2086, %v2180
    %v2202 = vadd.f32 %v2056, %v2182
    %v2203 = vadd.f32 %v2087, %v2183
    %v2204 = vadd.f32 %v2088, %v2184
    %v2205 = vadd.f32 %v2089, %v2185
    %v2206 = vadd.f32 %v2090, %v2186
    %v2207 = vadd.f32 %v2091, %v2187
    %v2208 = vadd.f32 %v2092, %v2180
    %v2209 = vadd.f32 %v2093, %v2182
    %v2210 = vadd.f32 %v2059, %v2183
    %v2211 = vadd.f32 %v2094, %v2184
    %v2212 = vadd.f32 %v2095, %v2185
    %v2213 = vadd.f32 %v2096, %v2186
    %v2214 = vadd.f32 %v2097, %v2187
    %v2215 = vadd.f32 %v2098, %v2180
    %v2216 = vadd.f32 %v2099, %v2182
    %v2217 = vadd.f32 %v2100, %v2183
    %v2218 = vadd.f32 %v2062, %v2184
    %v2219 = vadd.f32 %v2101, %v2185
    %v2220 = vadd.f32 %v2102, %v2186
    %v2221 = vadd.f32 %v2103, %v2187
    %v2222 = vadd.f32 %v2104, %v2180
    %v2223 = vadd.f32 %v2105, %v2182
    %v2224 = vadd.f32 %v2106, %v2183
    %v2225 = vadd.f32 %v2107, %v2184
    %v2226 = vadd.f32 %v2065, %v2185
    %v2227 = vadd.f32 %v2108, %v2186
    %v2228 = vadd.f32 %v2109, %v2187
    %v2229 = vadd.f32 %v2110, %v2180
    %v2230 = vadd.f32 %v2111, %v2182
    %v2231 = vadd.f32 %v2112, %v2183
    %v2232 = vadd.f32 %v2113, %v2184
    %v2233 = vadd.f32 %v2114, %v2185
    %v2234 = vadd.f32 %v2068, %v2186
    %v2235 = vadd.f32 %v2115, %v2187
    %v2236 = vadd.f32 %v2116, %v2180
    %v2237 = vadd.f32 %v2117, %v2182
    %v2238 = vadd.f32 %v2118, %v2183
    %v2239 = vadd.f32 %v2119, %v2184
    %v2240 = vadd.f32 %v2120, %v2185
    %v2241 = vadd.f32 %v2121, %v2186
    %v2242 = vadd.f32 %v2071, %v2187
    %v2243 = vadd.f32 %v2122, %v2180
    %v2244 = vadd.f32 %v2123, %v2182
    %v2245 = vadd.f32 %v2124, %v2183
    %v2246 = vadd.f32 %v2125, %v2184
    %v2247 = vadd.f32 %v2126, %v2185
    %v2248 = vadd.f32 %v2127, %v2186
    %v2249 = vadd.f32 %v2128, %v2187
    %s2306 = scalar_lea.vmem [#allocation1], 2
    %2307 = vst [vmem:[%s2306] ss:$9 sm:$0xff] %v2194
    %s2308 = scalar_lea.vmem [#allocation1], 3
    %2309 = vst [vmem:[%s2308] ss:$9 sm:$0xff] %v2195
    %s2310 = scalar_lea.vmem [#allocation1], 4
    %2311 = vst [vmem:[%s2310] ss:$9 sm:$0xff] %v2196
    %s2312 = scalar_lea.vmem [#allocation1], 5
    %2313 = vst [vmem:[%s2312] ss:$9 sm:$0xff] %v2197
    %s2314 = scalar_lea.vmem [#allocation1], 6
    %2315 = vst [vmem:[%s2314] ss:$9 sm:$0xff] %v2198
    %s2316 = scalar_lea.vmem [#allocation1], 7
    %2317 = vst [vmem:[%s2316] ss:$9 sm:$0xff] %v2199
    %v2318 = vld [vmem:[#allocation1] sm:$0xff]
    %2319 = vst [vmem:[#allocation1] ss:$9 sm:$0xff] %v2200
    %v2320 = vld [vmem:[#allocation1] sm:$0xff]
    %2321 = vst [vmem:[%s2306] ss:$9 sm:$0xff] %v2201
    %2322 = vst [vmem:[%s2308] ss:$9 sm:$0xff] %v2202
    %2323 = vst [vmem:[%s2310] ss:$9 sm:$0xff] %v2203
    %2324 = vst [vmem:[%s2312] ss:$9 sm:$0xff] %v2204
    %2325 = vst [vmem:[%s2314] ss:$9 sm:$0xff] %v2205
    %2326 = vst [vmem:[%s2316] ss:$9 sm:$0xff] %v2206
    %v2327 = vld [vmem:[#allocation1] sm:$0xff]
    %2328 = vst [vmem:[#allocation1] ss:$9 sm:$0xff] %v2207
    %v2329 = vld [vmem:[#allocation1] sm:$0xff]
    %2330 = vst [vmem:[%s2306] ss:$9 sm:$0xff] %v2208
    %2331 = vst [vmem:[%s2308] ss:$9 sm:$0xff] %v2209
    %2332 = vst [vmem:[%s2310] ss:$9 sm:$0xff] %v2210
    %2333 = vst [vmem:[%s2312] ss:$9 sm:$0xff] %v2211
    %2334 = vst [vmem:[%s2314] ss:$9 sm:$0xff] %v2212
    %2335 = vst [vmem:[%s2316] ss:$9 sm:$0xff] %v2213
    %v2336 = vld [vmem:[#allocation1] sm:$0xff]
    %2337 = vst [vmem:[#allocation1] ss:$9 sm:$0xff] %v2214
    %v2338 = vld [vmem:[#allocation1] sm:$0xff]
    %2339 = vst [vmem:[%s2306] ss:$9 sm:$0xff] %v2215
    %2340 = vst [vmem:[%s2308] ss:$9 sm:$0xff] %v2216
    %2341 = vst [vmem:[%s2310] ss:$9 sm:$0xff] %v2217
    %2342 = vst [vmem:[%s2312] ss:$9 sm:$0xff] %v2218
    %2343 = vst [vmem:[%s2314] ss:$9 sm:$0xff] %v2219
    %2344 = vst [vmem:[%s2316] ss:$9 sm:$0xff] %v2220
    %v2345 = vld [vmem:[#allocation1] sm:$0xff]
    %2346 = vst [vmem:[#allocation1] ss:$9 sm:$0xff] %v2221
    %v2347 = vld [vmem:[#allocation1] sm:$0xff]
    %2348 = vst [vmem:[%s2306] ss:$9 sm:$0xff] %v2222
    %2349 = vst [vmem:[%s2308] ss:$9 sm:$0xff] %v2223
    %2350 = vst [vmem:[%s2310] ss:$9 sm:$0xff] %v2224
    %2351 = vst [vmem:[%s2312] ss:$9 sm:$0xff] %v2225
    %2352 = vst [vmem:[%s2314] ss:$9 sm:$0xff] %v2226
    %2353 = vst [vmem:[%s2316] ss:$9 sm:$0xff] %v2227
    %v2354 = vld [vmem:[#allocation1] sm:$0xff]
    %2355 = vst [vmem:[#allocation1] ss:$9 sm:$0xff] %v2228
    %v2356 = vld [vmem:[#allocation1] sm:$0xff]
    %2357 = vst [vmem:[%s2306] ss:$9 sm:$0xff] %v2229
    %2358 = vst [vmem:[%s2308] ss:$9 sm:$0xff] %v2230
    %2359 = vst [vmem:[%s2310] ss:$9 sm:$0xff] %v2231
    %2360 = vst [vmem:[%s2312] ss:$9 sm:$0xff] %v2232
    %2361 = vst [vmem:[%s2314] ss:$9 sm:$0xff] %v2233
    %2362 = vst [vmem:[%s2316] ss:$9 sm:$0xff] %v2234
    %v2363 = vld [vmem:[#allocation1] sm:$0xff]
    %2364 = vst [vmem:[#allocation1] ss:$9 sm:$0xff] %v2235
    %v2365 = vld [vmem:[#allocation1] sm:$0xff]
    %2366 = vst [vmem:[%s2306] ss:$9 sm:$0xff] %v2236
    %2367 = vst [vmem:[%s2308] ss:$9 sm:$0xff] %v2237
    %2368 = vst [vmem:[%s2310] ss:$9 sm:$0xff] %v2238
    %2369 = vst [vmem:[%s2312] ss:$9 sm:$0xff] %v2239
    %2370 = vst [vmem:[%s2314] ss:$9 sm:$0xff] %v2240
    %2371 = vst [vmem:[%s2316] ss:$9 sm:$0xff] %v2241
    %v2372 = vld [vmem:[#allocation1] sm:$0xff]
    %2373 = vst [vmem:[#allocation1] ss:$9 sm:$0xff] %v2242
    %v2374 = vld [vmem:[#allocation1] sm:$0xff]
    %2375 = vst [vmem:[%s2306] ss:$9 sm:$0xff] %v2243
    %2376 = vst [vmem:[%s2308] ss:$9 sm:$0xff] %v2244
    %2377 = vst [vmem:[%s2310] ss:$9 sm:$0xff] %v2245
    %2378 = vst [vmem:[%s2312] ss:$9 sm:$0xff] %v2246
    %2379 = vst [vmem:[%s2314] ss:$9 sm:$0xff] %v2247
    %2380 = vst [vmem:[%s2316] ss:$9 sm:$0xff] %v2248
    %v2381 = vld [vmem:[#allocation1] sm:$0xff]
    %2382 = vst [vmem:[#allocation1] ss:$9 sm:$0xff] %v2249
    %v2383 = vld [vmem:[#allocation1] sm:$0xff]
    %v2400 = vsel %vm154, 0.0, %v2318
    %v2401 = vsel %vm154, 0.0, %v2327
    %v2402 = vsel %vm154, 0.0, %v2336
    %v2403 = vsel %vm154, 0.0, %v2345
    %v2404 = vsel %vm154, 0.0, %v2354
    %v2405 = vsel %vm154, 0.0, %v2363
    %v2406 = vsel %vm154, 0.0, %v2372
    %v2407 = vsel %vm154, 0.0, %v2381
    %v2408 = vsel %vm1652, %v2320, 0.0
    %v2409 = vsel %vm1652, %v2329, 0.0
    %v2410 = vsel %vm1652, %v2338, 0.0
    %v2411 = vsel %vm1652, %v2347, 0.0
    %v2412 = vsel %vm1652, %v2356, 0.0
    %v2413 = vsel %vm1652, %v2365, 0.0
    %v2414 = vsel %vm1652, %v2374, 0.0
    %v2415 = vsel %vm1652, %v2383, 0.0
    %v2424 = vrot.slane %v2400, 1
    %v2425 = vrot.slane %v2401, 1
    %v2426 = vrot.slane %v2402, 1
    %v2427 = vrot.slane %v2403, 1
    %v2428 = vrot.slane %v2404, 1
    %v2429 = vrot.slane %v2405, 1
    %v2430 = vrot.slane %v2406, 1
    %v2431 = vrot.slane %v2407, 1
    %2432 = vrot.lane.b32.xlu0 %v2424, 32
    %v2433 = vpop.permute.xlu0 %2432
    %2434 = vrot.lane.b32.xlu0 %v2425, 32
    %v2435 = vpop.permute.xlu0 %2434
    %2436 = vrot.lane.b32.xlu0 %v2426, 32
    %v2437 = vpop.permute.xlu0 %2436
    %2438 = vrot.lane.b32.xlu0 %v2427, 32
    %v2439 = vpop.permute.xlu0 %2438
    %2440 = vrot.lane.b32.xlu0 %v2428, 32
    %v2441 = vpop.permute.xlu0 %2440
    %2442 = vrot.lane.b32.xlu0 %v2429, 32
    %v2443 = vpop.permute.xlu0 %2442
    %2444 = vrot.lane.b32.xlu0 %v2430, 32
    %v2445 = vpop.permute.xlu0 %2444
    %2446 = vrot.lane.b32.xlu0 %v2431, 32
    %v2447 = vpop.permute.xlu0 %2446
    %v2464 = vrot.slane %v2400, 2
    %v2465 = vrot.slane %v2408, 2
    %v2466 = vsel %vm528, %v2464, %v2465
    %v2467 = vrot.slane %v2401, 2
    %v2468 = vrot.slane %v2409, 2
    %v2469 = vsel %vm528, %v2467, %v2468
    %v2470 = vrot.slane %v2402, 2
    %v2471 = vrot.slane %v2410, 2
    %v2472 = vsel %vm528, %v2470, %v2471
    %v2473 = vrot.slane %v2403, 2
    %v2474 = vrot.slane %v2411, 2
    %v2475 = vsel %vm528, %v2473, %v2474
    %v2476 = vrot.slane %v2404, 2
    %v2477 = vrot.slane %v2412, 2
    %v2478 = vsel %vm528, %v2476, %v2477
    %v2479 = vrot.slane %v2405, 2
    %v2480 = vrot.slane %v2413, 2
    %v2481 = vsel %vm528, %v2479, %v2480
    %v2482 = vrot.slane %v2406, 2
    %v2483 = vrot.slane %v2414, 2
    %v2484 = vsel %vm528, %v2482, %v2483
    %v2485 = vrot.slane %v2407, 2
    %v2486 = vrot.slane %v2415, 2
    %v2487 = vsel %vm528, %v2485, %v2486
    %2488 = vrot.lane.b32.xlu0 %v2466, 64
    %v2489 = vpop.permute.xlu0 %2488
    %2490 = vrot.lane.b32.xlu0 %v2469, 64
    %v2491 = vpop.permute.xlu0 %2490
    %2492 = vrot.lane.b32.xlu0 %v2472, 64
    %v2493 = vpop.permute.xlu0 %2492
    %2494 = vrot.lane.b32.xlu0 %v2475, 64
    %v2495 = vpop.permute.xlu0 %2494
    %2496 = vrot.lane.b32.xlu0 %v2478, 64
    %v2497 = vpop.permute.xlu0 %2496
    %2498 = vrot.lane.b32.xlu0 %v2481, 64
    %v2499 = vpop.permute.xlu0 %2498
    %2500 = vrot.lane.b32.xlu0 %v2484, 64
    %v2501 = vpop.permute.xlu0 %2500
    %2502 = vrot.lane.b32.xlu0 %v2487, 64
    %v2503 = vpop.permute.xlu0 %2502
    %v2512 = vrot.slane %v2400, 3
    %v2513 = vrot.slane %v2408, 3
    %v2514 = vsel %vm650, %v2512, %v2513
    %v2515 = vrot.slane %v2401, 3
    %v2516 = vrot.slane %v2409, 3
    %v2517 = vsel %vm650, %v2515, %v2516
    %v2518 = vrot.slane %v2402, 3
    %v2519 = vrot.slane %v2410, 3
    %v2520 = vsel %vm650, %v2518, %v2519
    %v2521 = vrot.slane %v2403, 3
    %v2522 = vrot.slane %v2411, 3
    %v2523 = vsel %vm650, %v2521, %v2522
    %v2524 = vrot.slane %v2404, 3
    %v2525 = vrot.slane %v2412, 3
    %v2526 = vsel %vm650, %v2524, %v2525
    %v2527 = vrot.slane %v2405, 3
    %v2528 = vrot.slane %v2413, 3
    %v2529 = vsel %vm650, %v2527, %v2528
    %v2530 = vrot.slane %v2406, 3
    %v2531 = vrot.slane %v2414, 3
    %v2532 = vsel %vm650, %v2530, %v2531
    %v2533 = vrot.slane %v2407, 3
    %v2534 = vrot.slane %v2415, 3
    %v2535 = vsel %vm650, %v2533, %v2534
    %2536 = vrot.lane.b32.xlu0 %v2514, 96
    %v2537 = vpop.permute.xlu0 %2536
    %2538 = vrot.lane.b32.xlu0 %v2517, 96
    %v2539 = vpop.permute.xlu0 %2538
    %2540 = vrot.lane.b32.xlu0 %v2520, 96
    %v2541 = vpop.permute.xlu0 %2540
    %2542 = vrot.lane.b32.xlu0 %v2523, 96
    %v2543 = vpop.permute.xlu0 %2542
    %2544 = vrot.lane.b32.xlu0 %v2526, 96
    %v2545 = vpop.permute.xlu0 %2544
    %2546 = vrot.lane.b32.xlu0 %v2529, 96
    %v2547 = vpop.permute.xlu0 %2546
    %2548 = vrot.lane.b32.xlu0 %v2532, 96
    %v2549 = vpop.permute.xlu0 %2548
    %2550 = vrot.lane.b32.xlu0 %v2535, 96
    %v2551 = vpop.permute.xlu0 %2550
    %v2560 = vrot.slane %v2400, 4
    %v2561 = vrot.slane %v2408, 4
    %v2562 = vsel %vm772, %v2560, %v2561
    %v2563 = vrot.slane %v2401, 4
    %v2564 = vrot.slane %v2409, 4
    %v2565 = vsel %vm772, %v2563, %v2564
    %v2566 = vrot.slane %v2402, 4
    %v2567 = vrot.slane %v2410, 4
    %v2568 = vsel %vm772, %v2566, %v2567
    %v2569 = vrot.slane %v2403, 4
    %v2570 = vrot.slane %v2411, 4
    %v2571 = vsel %vm772, %v2569, %v2570
    %v2572 = vrot.slane %v2404, 4
    %v2573 = vrot.slane %v2412, 4
    %v2574 = vsel %vm772, %v2572, %v2573
    %v2575 = vrot.slane %v2405, 4
    %v2576 = vrot.slane %v2413, 4
    %v2577 = vsel %vm772, %v2575, %v2576
    %v2578 = vrot.slane %v2406, 4
    %v2579 = vrot.slane %v2414, 4
    %v2580 = vsel %vm772, %v2578, %v2579
    %v2581 = vrot.slane %v2407, 4
    %v2582 = vrot.slane %v2415, 4
    %v2583 = vsel %vm772, %v2581, %v2582
    %v2584 = vsel %vm1330, %v2400, %v2433
    %v2585 = vsel %vm1330, %v2401, %v2435
    %v2586 = vsel %vm1330, %v2402, %v2437
    %v2587 = vsel %vm1330, %v2403, %v2439
    %v2588 = vsel %vm1330, %v2404, %v2441
    %v2589 = vsel %vm1330, %v2405, %v2443
    %v2590 = vsel %vm1330, %v2406, %v2445
    %v2591 = vsel %vm1330, %v2407, %v2447
    %v2592 = vsel %vm1364, %v2584, %v2489
    %v2593 = vsel %vm1364, %v2585, %v2491
    %v2594 = vsel %vm1364, %v2586, %v2493
    %v2595 = vsel %vm1364, %v2587, %v2495
    %v2596 = vsel %vm1364, %v2588, %v2497
    %v2597 = vsel %vm1364, %v2589, %v2499
    %v2598 = vsel %vm1364, %v2590, %v2501
    %v2599 = vsel %vm1364, %v2591, %v2503
    %vm2600 = vcmask 785408
    %v2601 = vsel %vm2600, %v2592, %v2537
    %v2602 = vsel %vm2600, %v2593, %v2539
    %v2603 = vsel %vm2600, %v2594, %v2541
    %v2604 = vsel %vm2600, %v2595, %v2543
    %v2605 = vsel %vm2600, %v2596, %v2545
    %v2606 = vsel %vm2600, %v2597, %v2547
    %v2607 = vsel %vm2600, %v2598, %v2549
    %v2608 = vsel %vm2600, %v2599, %v2551
    %v2617 = vrot.slane %v2562, 7
    %v2618 = vrot.slane %v2565, 7
    %v2619 = vrot.slane %v2568, 7
    %v2620 = vrot.slane %v2571, 7
    %v2621 = vrot.slane %v2574, 7
    %v2622 = vrot.slane %v2577, 7
    %v2623 = vrot.slane %v2580, 7
    %v2624 = vrot.slane %v2583, 7
    %v2625 = vsel %vm1652, %v2601, %v2617
    %vm2626 = vcmask 1041409
    %v2627 = vsel %vm2626, %v2601, %v2617
    %v2628 = vrot.slane %v2627, 1
    %vm2629 = vcmask 1042434
    %v2630 = vsel %vm2629, %v2601, %v2617
    %v2631 = vrot.slane %v2630, 2
    %vm2632 = vcmask 1043459
    %v2633 = vsel %vm2632, %v2601, %v2617
    %v2634 = vrot.slane %v2633, 3
    %vm2635 = vcmask 1044484
    %v2636 = vsel %vm2635, %v2601, %v2617
    %v2637 = vrot.slane %v2636, 4
    %vm2638 = vcmask 1045509
    %v2639 = vsel %vm2638, %v2601, %v2617
    %v2640 = vrot.slane %v2639, 5
    %vm2641 = vcmask 1046534
    %v2642 = vsel %vm2641, %v2601, %v2617
    %v2643 = vrot.slane %v2642, 6
    %v2644 = vsel %vm1652, %v2602, %v2618
    %v2645 = vsel %vm2626, %v2602, %v2618
    %v2646 = vrot.slane %v2645, 1
    %v2647 = vsel %vm2629, %v2602, %v2618
    %v2648 = vrot.slane %v2647, 2
    %v2649 = vsel %vm2632, %v2602, %v2618
    %v2650 = vrot.slane %v2649, 3
    %v2651 = vsel %vm2635, %v2602, %v2618
    %v2652 = vrot.slane %v2651, 4
    %v2653 = vsel %vm2638, %v2602, %v2618
    %v2654 = vrot.slane %v2653, 5
    %v2655 = vsel %vm2641, %v2602, %v2618
    %v2656 = vrot.slane %v2655, 6
    %v2657 = vsel %vm1652, %v2603, %v2619
    %v2658 = vsel %vm2626, %v2603, %v2619
    %v2659 = vrot.slane %v2658, 1
    %v2660 = vsel %vm2629, %v2603, %v2619
    %v2661 = vrot.slane %v2660, 2
    %v2662 = vsel %vm2632, %v2603, %v2619
    %v2663 = vrot.slane %v2662, 3
    %v2664 = vsel %vm2635, %v2603, %v2619
    %v2665 = vrot.slane %v2664, 4
    %v2666 = vsel %vm2638, %v2603, %v2619
    %v2667 = vrot.slane %v2666, 5
    %v2668 = vsel %vm2641, %v2603, %v2619
    %v2669 = vrot.slane %v2668, 6
    %v2670 = vsel %vm1652, %v2604, %v2620
    %v2671 = vsel %vm2626, %v2604, %v2620
    %v2672 = vrot.slane %v2671, 1
    %v2673 = vsel %vm2629, %v2604, %v2620
    %v2674 = vrot.slane %v2673, 2
    %v2675 = vsel %vm2632, %v2604, %v2620
    %v2676 = vrot.slane %v2675, 3
    %v2677 = vsel %vm2635, %v2604, %v2620
    %v2678 = vrot.slane %v2677, 4
    %v2679 = vsel %vm2638, %v2604, %v2620
    %v2680 = vrot.slane %v2679, 5
    %v2681 = vsel %vm2641, %v2604, %v2620
    %v2682 = vrot.slane %v2681, 6
    %v2683 = vsel %vm1652, %v2605, %v2621
    %v2684 = vsel %vm2626, %v2605, %v2621
    %v2685 = vrot.slane %v2684, 1
    %v2686 = vsel %vm2629, %v2605, %v2621
    %v2687 = vrot.slane %v2686, 2
    %v2688 = vsel %vm2632, %v2605, %v2621
    %v2689 = vrot.slane %v2688, 3
    %v2690 = vsel %vm2635, %v2605, %v2621
    %v2691 = vrot.slane %v2690, 4
    %v2692 = vsel %vm2638, %v2605, %v2621
    %v2693 = vrot.slane %v2692, 5
    %v2694 = vsel %vm2641, %v2605, %v2621
    %v2695 = vrot.slane %v2694, 6
    %v2696 = vsel %vm1652, %v2606, %v2622
    %v2697 = vsel %vm2626, %v2606, %v2622
    %v2698 = vrot.slane %v2697, 1
    %v2699 = vsel %vm2629, %v2606, %v2622
    %v2700 = vrot.slane %v2699, 2
    %v2701 = vsel %vm2632, %v2606, %v2622
    %v2702 = vrot.slane %v2701, 3
    %v2703 = vsel %vm2635, %v2606, %v2622
    %v2704 = vrot.slane %v2703, 4
    %v2705 = vsel %vm2638, %v2606, %v2622
    %v2706 = vrot.slane %v2705, 5
    %v2707 = vsel %vm2641, %v2606, %v2622
    %v2708 = vrot.slane %v2707, 6
    %v2709 = vsel %vm1652, %v2607, %v2623
    %v2710 = vsel %vm2626, %v2607, %v2623
    %v2711 = vrot.slane %v2710, 1
    %v2712 = vsel %vm2629, %v2607, %v2623
    %v2713 = vrot.slane %v2712, 2
    %v2714 = vsel %vm2632, %v2607, %v2623
    %v2715 = vrot.slane %v2714, 3
    %v2716 = vsel %vm2635, %v2607, %v2623
    %v2717 = vrot.slane %v2716, 4
    %v2718 = vsel %vm2638, %v2607, %v2623
    %v2719 = vrot.slane %v2718, 5
    %v2720 = vsel %vm2641, %v2607, %v2623
    %v2721 = vrot.slane %v2720, 6
    %v2722 = vsel %vm1652, %v2608, %v2624
    %v2723 = vsel %vm2626, %v2608, %v2624
    %v2724 = vrot.slane %v2723, 1
    %v2725 = vsel %vm2629, %v2608, %v2624
    %v2726 = vrot.slane %v2725, 2
    %v2727 = vsel %vm2632, %v2608, %v2624
    %v2728 = vrot.slane %v2727, 3
    %v2729 = vsel %vm2635, %v2608, %v2624
    %v2730 = vrot.slane %v2729, 4
    %v2731 = vsel %vm2638, %v2608, %v2624
    %v2732 = vrot.slane %v2731, 5
    %v2733 = vsel %vm2641, %v2608, %v2624
    %v2734 = vrot.slane %v2733, 6
    %v2735 = vld [vmem:[%s7] sm:$0xff]
    %v2736 = vld [vmem:[%s7 + $0x8] sm:$0xff]
    %v2737 = vld [vmem:[%s7 + $0x10] sm:$0xff]
    %v2738 = vld [vmem:[%s7 + $0x18] sm:$0xff]
    %v2739 = vld [vmem:[%s7 + $0x20] sm:$0xff]
    %v2740 = vld [vmem:[%s7 + $0x28] sm:$0xff]
    %v2741 = vld [vmem:[%s7 + $0x30] sm:$0xff]
    %v2742 = vld [vmem:[%s7 + $0x38] sm:$0xff]
    %v2743 = vld [vmem:[%s7 + $0x40] sm:$0xff]
    %v2744 = vld [vmem:[%s7 + $0x48] sm:$0xff]
    %v2745 = vld [vmem:[%s7 + $0x50] sm:$0xff]
    %v2746 = vld [vmem:[%s7 + $0x58] sm:$0xff]
    %v2747 = vld [vmem:[%s7 + $0x60] sm:$0xff]
    %v2748 = vld [vmem:[%s7 + $0x68] sm:$0xff]
    %v2749 = vld [vmem:[%s7 + $0x70] sm:$0xff]
    %v2750 = vld [vmem:[%s7 + $0x78] sm:$0xff]
    %v2751 = vld [vmem:[%s7 + $0x80] sm:$0xff]
    %v2752 = vld [vmem:[%s7 + $0x88] sm:$0xff]
    %v2753 = vld [vmem:[%s7 + $0x90] sm:$0xff]
    %v2754 = vld [vmem:[%s7 + $0x98] sm:$0xff]
    %2755 = vst [vmem:[#allocation1] ss:$9 sm:$0xff] %v2625
    %s2756 = scalar_lea.vmem [#allocation1], 1
    %2757 = vst [vmem:[%s2756] ss:$9 sm:$0xff] %v2628
    %s2758 = scalar_lea.vmem [#allocation1], 2
    %2759 = vst [vmem:[%s2758] ss:$9 sm:$0xff] %v2631
    %s2760 = scalar_lea.vmem [#allocation1], 3
    %2761 = vst [vmem:[%s2760] ss:$9 sm:$0xff] %v2634
    %s2762 = scalar_lea.vmem [#allocation1], 4
    %2763 = vst [vmem:[%s2762] ss:$9 sm:$0xff] %v2637
    %s2764 = scalar_lea.vmem [#allocation1], 5
    %2765 = vst [vmem:[%s2764] ss:$9 sm:$0xff] %v2640
    %s2766 = scalar_lea.vmem [#allocation1], 6
    %2767 = vst [vmem:[%s2766] ss:$9 sm:$0xff] %v2643
    %s2768 = scalar_lea.vmem [#allocation1], 7
    %2769 = vst [vmem:[%s2768] ss:$9 sm:$0xff] %v2644
    %v2770 = vld [vmem:[#allocation1] sm:$0xff]
    %v2771 = vld [vmem:[#allocation1 + $0x9] sm:$0xff]
    %2772 = vst [vmem:[#allocation1] ss:$9 sm:$0xff] %v2646
    %2773 = vst [vmem:[%s2756] ss:$9 sm:$0xff] %v2648
    %2774 = vst [vmem:[%s2758] ss:$9 sm:$0xff] %v2650
    %2775 = vst [vmem:[%s2760] ss:$9 sm:$0xff] %v2652
    %2776 = vst [vmem:[%s2762] ss:$9 sm:$0xff] %v2654
    %2777 = vst [vmem:[%s2764] ss:$9 sm:$0xff] %v2656
    %2778 = vst [vmem:[%s2766] ss:$9 sm:$0xff] %v2657
    %2779 = vst [vmem:[%s2768] ss:$9 sm:$0xff] %v2659
    %v2780 = vld [vmem:[#allocation1] sm:$0xff]
    %v2781 = vld [vmem:[#allocation1 + $0x9] sm:$0xff]
    %2782 = vst [vmem:[#allocation1] ss:$9 sm:$0xff] %v2661
    %2783 = vst [vmem:[%s2756] ss:$9 sm:$0xff] %v2663
    %2784 = vst [vmem:[%s2758] ss:$9 sm:$0xff] %v2665
    %2785 = vst [vmem:[%s2760] ss:$9 sm:$0xff] %v2667
    %2786 = vst [vmem:[%s2762] ss:$9 sm:$0xff] %v2669
    %2787 = vst [vmem:[%s2764] ss:$9 sm:$0xff] %v2670
    %2788 = vst [vmem:[%s2766] ss:$9 sm:$0xff] %v2672
    %2789 = vst [vmem:[%s2768] ss:$9 sm:$0xff] %v2674
    %v2790 = vld [vmem:[#allocation1] sm:$0xff]
    %v2791 = vld [vmem:[#allocation1 + $0x9] sm:$0xff]
    %2792 = vst [vmem:[#allocation1] ss:$9 sm:$0xff] %v2676
    %2793 = vst [vmem:[%s2756] ss:$9 sm:$0xff] %v2678
    %2794 = vst [vmem:[%s2758] ss:$9 sm:$0xff] %v2680
    %2795 = vst [vmem:[%s2760] ss:$9 sm:$0xff] %v2682
    %2796 = vst [vmem:[%s2762] ss:$9 sm:$0xff] %v2683
    %2797 = vst [vmem:[%s2764] ss:$9 sm:$0xff] %v2685
    %2798 = vst [vmem:[%s2766] ss:$9 sm:$0xff] %v2687
    %2799 = vst [vmem:[%s2768] ss:$9 sm:$0xff] %v2689
    %v2800 = vld [vmem:[#allocation1] sm:$0xff]
    %v2801 = vld [vmem:[#allocation1 + $0x9] sm:$0xff]
    %2802 = vst [vmem:[#allocation1] ss:$9 sm:$0xff] %v2691
    %2803 = vst [vmem:[%s2756] ss:$9 sm:$0xff] %v2693
    %2804 = vst [vmem:[%s2758] ss:$9 sm:$0xff] %v2695
    %2805 = vst [vmem:[%s2760] ss:$9 sm:$0xff] %v2696
    %2806 = vst [vmem:[%s2762] ss:$9 sm:$0xff] %v2698
    %2807 = vst [vmem:[%s2764] ss:$9 sm:$0xff] %v2700
    %2808 = vst [vmem:[%s2766] ss:$9 sm:$0xff] %v2702
    %2809 = vst [vmem:[%s2768] ss:$9 sm:$0xff] %v2704
    %v2810 = vld [vmem:[#allocation1] sm:$0xff]
    %v2811 = vld [vmem:[#allocation1 + $0x9] sm:$0xff]
    %2812 = vst [vmem:[#allocation1] ss:$9 sm:$0xff] %v2706
    %2813 = vst [vmem:[%s2756] ss:$9 sm:$0xff] %v2708
    %2814 = vst [vmem:[%s2758] ss:$9 sm:$0xff] %v2709
    %2815 = vst [vmem:[%s2760] ss:$9 sm:$0xff] %v2711
    %2816 = vst [vmem:[%s2762] ss:$9 sm:$0xff] %v2713
    %2817 = vst [vmem:[%s2764] ss:$9 sm:$0xff] %v2715
    %2818 = vst [vmem:[%s2766] ss:$9 sm:$0xff] %v2717
    %2819 = vst [vmem:[%s2768] ss:$9 sm:$0xff] %v2719
    %v2820 = vld [vmem:[#allocation1] sm:$0xff]
    %v2821 = vld [vmem:[#allocation1 + $0x9] sm:$0xff]
    %2822 = vst [vmem:[#allocation1] ss:$9 sm:$0xff] %v2721
    %2823 = vst [vmem:[%s2756] ss:$9 sm:$0xff] %v2722
    %2824 = vst [vmem:[%s2758] ss:$9 sm:$0xff] %v2724
    %2825 = vst [vmem:[%s2760] ss:$9 sm:$0xff] %v2726
    %2826 = vst [vmem:[%s2762] ss:$9 sm:$0xff] %v2728
    %2827 = vst [vmem:[%s2764] ss:$9 sm:$0xff] %v2730
    %2828 = vst [vmem:[%s2766] ss:$9 sm:$0xff] %v2732
    %2829 = vst [vmem:[%s2768] ss:$9 sm:$0xff] %v2734
    %v2830 = vld [vmem:[#allocation1] sm:$0xff]
    %v2831 = vld [vmem:[#allocation1 + $0x9] sm:$0xff]
    %v2839 = vsel %vm1330, %v2771, 0
    %v2841 = vsel %vm1330, %v2781, 0
    %v2843 = vsel %vm1330, %v2791, 0
    %v2845 = vsel %vm1330, %v2801, 0
    %v2847 = vsel %vm1330, %v2811, 0
    %v2849 = vsel %vm1330, %v2821, 0
    %v2851 = vsel %vm1330, %v2831, 0
    %2853 = vmatpush.msra.mxu0 %v2750
    %2854 = vmatpush.msra.mxu0 %v2749
    %2855 = vmatpush.msra.mxu0 %v2748
    %2856 = vmatpush.msra.mxu0 %v2747
    %2857 = vmatpush.msra.mxu0 %v2746
    %2858 = vmatpush.msra.mxu0 %v2745
    %2859 = vmatpush.msra.mxu0 %v2744
    %2860 = vmatpush.msra.mxu0 %v2743
    %2861 = vmatpush.msra.mxu0 %v2742
    %2862 = vmatpush.msra.mxu0 %v2741
    %2863 = vmatpush.msra.mxu0 %v2740
    %2864 = vmatpush.msra.mxu0 %v2739
    %2865 = vmatpush.msra.mxu0 %v2738
    %2866 = vmatpush.msra.mxu0 %v2737
    %2867 = vmatpush.msra.mxu0 %v2736
    %2868 = vmatpush.msra.mxu0 %v2735
    %2869 = vmatmul.f32.gmra.mxu0 %v2770
    %v2870 = vpop.f32.mrf.mxu0
    %v2871 = vadd.f32 0.0, %v2870
    %2872 = vmatmul.f32.gmra.mxu0 %v2780
    %v2873 = vpop.f32.mrf.mxu0
    %v2874 = vadd.f32 0.0, %v2873
    %2875 = vmatmul.f32.gmra.mxu0 %v2790
    %v2876 = vpop.f32.mrf.mxu0
    %v2877 = vadd.f32 0.0, %v2876
    %2878 = vmatmul.f32.gmra.mxu0 %v2800
    %v2879 = vpop.f32.mrf.mxu0
    %v2880 = vadd.f32 0.0, %v2879
    %2881 = vmatmul.f32.gmra.mxu0 %v2810
    %v2882 = vpop.f32.mrf.mxu0
    %v2883 = vadd.f32 0.0, %v2882
    %2884 = vmatmul.f32.gmra.mxu0 %v2820
    %v2885 = vpop.f32.mrf.mxu0
    %v2886 = vadd.f32 0.0, %v2885
    %2887 = vmatmul.f32.gmra.mxu0 %v2830
    %v2888 = vpop.f32.mrf.mxu0
    %v2889 = vadd.f32 0.0, %v2888
    %2890 = vdwg.mxu0
    %2891 = vmatpush.msra.mxu0 0.0
    %2892 = vmatpush.msra.mxu0 0.0
    %2893 = vmatpush.msra.mxu0 0.0
    %2894 = vmatpush.msra.mxu0 0.0
    %2895 = vmatpush.msra.mxu0 0.0
    %2896 = vmatpush.msra.mxu0 0.0
    %2897 = vmatpush.msra.mxu0 0.0
    %2898 = vmatpush.msra.mxu0 0.0
    %2899 = vmatpush.msra.mxu0 0.0
    %2900 = vmatpush.msra.mxu0 0.0
    %2901 = vmatpush.msra.mxu0 0.0
    %2902 = vmatpush.msra.mxu0 0.0
    %2903 = vmatpush.msra.mxu0 %v2754
    %2904 = vmatpush.msra.mxu0 %v2753
    %2905 = vmatpush.msra.mxu0 %v2752
    %2906 = vmatpush.msra.mxu0 %v2751
    %2907 = vmatmul.f32.gmra.mxu0 %v2839
    %v2908 = vpop.f32.mrf.mxu0
    %v2909 = vadd.f32 %v2871, %v2908
    %2910 = vmatmul.f32.gmra.mxu0 %v2841
    %v2911 = vpop.f32.mrf.mxu0
    %v2912 = vadd.f32 %v2874, %v2911
    %2913 = vmatmul.f32.gmra.mxu0 %v2843
    %v2914 = vpop.f32.mrf.mxu0
    %v2915 = vadd.f32 %v2877, %v2914
    %2916 = vmatmul.f32.gmra.mxu0 %v2845
    %v2917 = vpop.f32.mrf.mxu0
    %v2918 = vadd.f32 %v2880, %v2917
    %2919 = vmatmul.f32.gmra.mxu0 %v2847
    %v2920 = vpop.f32.mrf.mxu0
    %v2921 = vadd.f32 %v2883, %v2920
    %2922 = vmatmul.f32.gmra.mxu0 %v2849
    %v2923 = vpop.f32.mrf.mxu0
    %v2924 = vadd.f32 %v2886, %v2923
    %2925 = vmatmul.f32.gmra.mxu0 %v2851
    %v2926 = vpop.f32.mrf.mxu0
    %v2927 = vadd.f32 %v2889, %v2926
    %2928 = vdwg.mxu0
    %v2936 = vrot.slane %v2909, 1
    %v2937 = vrot.slane %v2909, 2
    %v2938 = vrot.slane %v2909, 3
    %v2939 = vrot.slane %v2909, 4
    %v2940 = vrot.slane %v2909, 5
    %v2941 = vrot.slane %v2909, 6
    %v2942 = vrot.slane %v2909, 7
    %v2943 = vrot.slane %v2912, 1
    %v2944 = vrot.slane %v2912, 2
    %v2945 = vrot.slane %v2912, 3
    %v2946 = vrot.slane %v2912, 4
    %v2947 = vrot.slane %v2912, 5
    %v2948 = vrot.slane %v2912, 6
    %v2949 = vrot.slane %v2912, 7
    %v2950 = vrot.slane %v2915, 1
    %v2951 = vrot.slane %v2915, 2
    %v2952 = vrot.slane %v2915, 3
    %v2953 = vrot.slane %v2915, 4
    %v2954 = vrot.slane %v2915, 5
    %v2955 = vrot.slane %v2915, 6
    %v2956 = vrot.slane %v2915, 7
    %v2957 = vrot.slane %v2918, 1
    %v2958 = vrot.slane %v2918, 2
    %v2959 = vrot.slane %v2918, 3
    %v2960 = vrot.slane %v2918, 4
    %v2961 = vrot.slane %v2918, 5
    %v2962 = vrot.slane %v2918, 6
    %v2963 = vrot.slane %v2918, 7
    %v2964 = vrot.slane %v2921, 1
    %v2965 = vrot.slane %v2921, 2
    %v2966 = vrot.slane %v2921, 3
    %v2967 = vrot.slane %v2921, 4
    %v2968 = vrot.slane %v2921, 5
    %v2969 = vrot.slane %v2921, 6
    %v2970 = vrot.slane %v2921, 7
    %v2971 = vrot.slane %v2924, 1
    %v2972 = vrot.slane %v2924, 2
    %v2973 = vrot.slane %v2924, 3
    %v2974 = vrot.slane %v2924, 4
    %v2975 = vrot.slane %v2924, 5
    %v2976 = vrot.slane %v2924, 6
    %v2977 = vrot.slane %v2924, 7
    %v2978 = vrot.slane %v2927, 1
    %v2979 = vrot.slane %v2927, 2
    %v2980 = vrot.slane %v2927, 3
    %v2981 = vrot.slane %v2927, 4
    %v2982 = vrot.slane %v2927, 5
    %v2983 = vrot.slane %v2927, 6
    %v2984 = vrot.slane %v2927, 7
    %v3034 = vld [vmem:[%s8] sm:$0x1]
    %v3036 = vperm.slane %v3034, 0
    %v3038 = vrot.slane %v3036, 1
    %v3039 = vrot.slane %v3036, 2
    %v3040 = vrot.slane %v3036, 3
    %v3041 = vrot.slane %v3036, 4
    %v3042 = vrot.slane %v3036, 5
    %v3043 = vrot.slane %v3036, 6
    %v3050 = vadd.f32 %v2909, %v3036
    %v3051 = vadd.f32 %v2936, %v3038
    %v3052 = vadd.f32 %v2937, %v3039
    %v3053 = vadd.f32 %v2938, %v3040
    %v3054 = vadd.f32 %v2939, %v3041
    %v3055 = vadd.f32 %v2940, %v3042
    %v3056 = vadd.f32 %v2941, %v3043
    %v3057 = vadd.f32 %v2942, %v3036
    %v3058 = vadd.f32 %v2912, %v3038
    %v3059 = vadd.f32 %v2943, %v3039
    %v3060 = vadd.f32 %v2944, %v3040
    %v3061 = vadd.f32 %v2945, %v3041
    %v3062 = vadd.f32 %v2946, %v3042
    %v3063 = vadd.f32 %v2947, %v3043
    %v3064 = vadd.f32 %v2948, %v3036
    %v3065 = vadd.f32 %v2949, %v3038
    %v3066 = vadd.f32 %v2915, %v3039
    %v3067 = vadd.f32 %v2950, %v3040
    %v3068 = vadd.f32 %v2951, %v3041
    %v3069 = vadd.f32 %v2952, %v3042
    %v3070 = vadd.f32 %v2953, %v3043
    %v3071 = vadd.f32 %v2954, %v3036
    %v3072 = vadd.f32 %v2955, %v3038
    %v3073 = vadd.f32 %v2956, %v3039
    %v3074 = vadd.f32 %v2918, %v3040
    %v3075 = vadd.f32 %v2957, %v3041
    %v3076 = vadd.f32 %v2958, %v3042
    %v3077 = vadd.f32 %v2959, %v3043
    %v3078 = vadd.f32 %v2960, %v3036
    %v3079 = vadd.f32 %v2961, %v3038
    %v3080 = vadd.f32 %v2962, %v3039
    %v3081 = vadd.f32 %v2963, %v3040
    %v3082 = vadd.f32 %v2921, %v3041
    %v3083 = vadd.f32 %v2964, %v3042
    %v3084 = vadd.f32 %v2965, %v3043
    %v3085 = vadd.f32 %v2966, %v3036
    %v3086 = vadd.f32 %v2967, %v3038
    %v3087 = vadd.f32 %v2968, %v3039
    %v3088 = vadd.f32 %v2969, %v3040
    %v3089 = vadd.f32 %v2970, %v3041
    %v3090 = vadd.f32 %v2924, %v3042
    %v3091 = vadd.f32 %v2971, %v3043
    %v3092 = vadd.f32 %v2972, %v3036
    %v3093 = vadd.f32 %v2973, %v3038
    %v3094 = vadd.f32 %v2974, %v3039
    %v3095 = vadd.f32 %v2975, %v3040
    %v3096 = vadd.f32 %v2976, %v3041
    %v3097 = vadd.f32 %v2977, %v3042
    %v3098 = vadd.f32 %v2927, %v3043
    %v3099 = vadd.f32 %v2978, %v3036
    %v3100 = vadd.f32 %v2979, %v3038
    %v3101 = vadd.f32 %v2980, %v3039
    %v3102 = vadd.f32 %v2981, %v3040
    %v3103 = vadd.f32 %v2982, %v3041
    %v3104 = vadd.f32 %v2983, %v3042
    %v3105 = vadd.f32 %v2984, %v3043
    %v3106 = vmax.f32 %v3050, 0.0
    %v3107 = vmax.f32 %v3051, 0.0
    %v3108 = vmax.f32 %v3052, 0.0
    %v3109 = vmax.f32 %v3053, 0.0
    %v3110 = vmax.f32 %v3054, 0.0
    %v3111 = vmax.f32 %v3055, 0.0
    %v3112 = vmax.f32 %v3056, 0.0
    %v3113 = vmax.f32 %v3057, 0.0
    %v3114 = vmax.f32 %v3058, 0.0
    %v3115 = vmax.f32 %v3059, 0.0
    %v3116 = vmax.f32 %v3060, 0.0
    %v3117 = vmax.f32 %v3061, 0.0
    %v3118 = vmax.f32 %v3062, 0.0
    %v3119 = vmax.f32 %v3063, 0.0
    %v3120 = vmax.f32 %v3064, 0.0
    %v3121 = vmax.f32 %v3065, 0.0
    %v3122 = vmax.f32 %v3066, 0.0
    %v3123 = vmax.f32 %v3067, 0.0
    %v3124 = vmax.f32 %v3068, 0.0
    %v3125 = vmax.f32 %v3069, 0.0
    %v3126 = vmax.f32 %v3070, 0.0
    %v3127 = vmax.f32 %v3071, 0.0
    %v3128 = vmax.f32 %v3072, 0.0
    %v3129 = vmax.f32 %v3073, 0.0
    %v3130 = vmax.f32 %v3074, 0.0
    %v3131 = vmax.f32 %v3075, 0.0
    %v3132 = vmax.f32 %v3076, 0.0
    %v3133 = vmax.f32 %v3077, 0.0
    %v3134 = vmax.f32 %v3078, 0.0
    %v3135 = vmax.f32 %v3079, 0.0
    %v3136 = vmax.f32 %v3080, 0.0
    %v3137 = vmax.f32 %v3081, 0.0
    %v3138 = vmax.f32 %v3082, 0.0
    %v3139 = vmax.f32 %v3083, 0.0
    %v3140 = vmax.f32 %v3084, 0.0
    %v3141 = vmax.f32 %v3085, 0.0
    %v3142 = vmax.f32 %v3086, 0.0
    %v3143 = vmax.f32 %v3087, 0.0
    %v3144 = vmax.f32 %v3088, 0.0
    %v3145 = vmax.f32 %v3089, 0.0
    %v3146 = vmax.f32 %v3090, 0.0
    %v3147 = vmax.f32 %v3091, 0.0
    %v3148 = vmax.f32 %v3092, 0.0
    %v3149 = vmax.f32 %v3093, 0.0
    %v3150 = vmax.f32 %v3094, 0.0
    %v3151 = vmax.f32 %v3095, 0.0
    %v3152 = vmax.f32 %v3096, 0.0
    %v3153 = vmax.f32 %v3097, 0.0
    %v3154 = vmax.f32 %v3098, 0.0
    %v3155 = vmax.f32 %v3099, 0.0
    %v3156 = vmax.f32 %v3100, 0.0
    %v3157 = vmax.f32 %v3101, 0.0
    %v3158 = vmax.f32 %v3102, 0.0
    %v3159 = vmax.f32 %v3103, 0.0
    %v3160 = vmax.f32 %v3104, 0.0
    %v3161 = vmax.f32 %v3105, 0.0
    %3218 = vst [vmem:[#allocation1] ss:$9 sm:$0xff] %v3106
    %s3219 = scalar_lea.vmem [#allocation1], 1
    %3220 = vst [vmem:[%s3219] ss:$9 sm:$0xff] %v3107
    %s3221 = scalar_lea.vmem [#allocation1], 2
    %3222 = vst [vmem:[%s3221] ss:$9 sm:$0xff] %v3108
    %s3223 = scalar_lea.vmem [#allocation1], 3
    %3224 = vst [vmem:[%s3223] ss:$9 sm:$0xff] %v3109
    %s3225 = scalar_lea.vmem [#allocation1], 4
    %3226 = vst [vmem:[%s3225] ss:$9 sm:$0xff] %v3110
    %s3227 = scalar_lea.vmem [#allocation1], 5
    %3228 = vst [vmem:[%s3227] ss:$9 sm:$0xff] %v3111
    %s3229 = scalar_lea.vmem [#allocation1], 6
    %3230 = vst [vmem:[%s3229] ss:$9 sm:$0xff] %v3112
    %v3231 = vld [vmem:[#allocation1] sm:$0xff]
    %3232 = vst [vmem:[#allocation1] ss:$9 sm:$0xff] %v3113
    %3233 = vst [vmem:[%s3219] ss:$9 sm:$0xff] %v3114
    %3234 = vst [vmem:[%s3221] ss:$9 sm:$0xff] %v3115
    %3235 = vst [vmem:[%s3223] ss:$9 sm:$0xff] %v3116
    %3236 = vst [vmem:[%s3225] ss:$9 sm:$0xff] %v3117
    %3237 = vst [vmem:[%s3227] ss:$9 sm:$0xff] %v3118
    %3238 = vst [vmem:[%s3229] ss:$9 sm:$0xff] %v3119
    %v3239 = vld [vmem:[#allocation1] sm:$0xff]
    %3240 = vst [vmem:[#allocation1] ss:$9 sm:$0xff] %v3120
    %3241 = vst [vmem:[%s3219] ss:$9 sm:$0xff] %v3121
    %3242 = vst [vmem:[%s3221] ss:$9 sm:$0xff] %v3122
    %3243 = vst [vmem:[%s3223] ss:$9 sm:$0xff] %v3123
    %3244 = vst [vmem:[%s3225] ss:$9 sm:$0xff] %v3124
    %3245 = vst [vmem:[%s3227] ss:$9 sm:$0xff] %v3125
    %3246 = vst [vmem:[%s3229] ss:$9 sm:$0xff] %v3126
    %v3247 = vld [vmem:[#allocation1] sm:$0xff]
    %3248 = vst [vmem:[#allocation1] ss:$9 sm:$0xff] %v3127
    %3249 = vst [vmem:[%s3219] ss:$9 sm:$0xff] %v3128
    %3250 = vst [vmem:[%s3221] ss:$9 sm:$0xff] %v3129
    %3251 = vst [vmem:[%s3223] ss:$9 sm:$0xff] %v3130
    %3252 = vst [vmem:[%s3225] ss:$9 sm:$0xff] %v3131
    %3253 = vst [vmem:[%s3227] ss:$9 sm:$0xff] %v3132
    %3254 = vst [vmem:[%s3229] ss:$9 sm:$0xff] %v3133
    %v3255 = vld [vmem:[#allocation1] sm:$0xff]
    %3256 = vst [vmem:[#allocation1] ss:$9 sm:$0xff] %v3134
    %3257 = vst [vmem:[%s3219] ss:$9 sm:$0xff] %v3135
    %3258 = vst [vmem:[%s3221] ss:$9 sm:$0xff] %v3136
    %3259 = vst [vmem:[%s3223] ss:$9 sm:$0xff] %v3137
    %3260 = vst [vmem:[%s3225] ss:$9 sm:$0xff] %v3138
    %3261 = vst [vmem:[%s3227] ss:$9 sm:$0xff] %v3139
    %3262 = vst [vmem:[%s3229] ss:$9 sm:$0xff] %v3140
    %v3263 = vld [vmem:[#allocation1] sm:$0xff]
    %3264 = vst [vmem:[#allocation1] ss:$9 sm:$0xff] %v3141
    %3265 = vst [vmem:[%s3219] ss:$9 sm:$0xff] %v3142
    %3266 = vst [vmem:[%s3221] ss:$9 sm:$0xff] %v3143
    %3267 = vst [vmem:[%s3223] ss:$9 sm:$0xff] %v3144
    %3268 = vst [vmem:[%s3225] ss:$9 sm:$0xff] %v3145
    %3269 = vst [vmem:[%s3227] ss:$9 sm:$0xff] %v3146
    %3270 = vst [vmem:[%s3229] ss:$9 sm:$0xff] %v3147
    %v3271 = vld [vmem:[#allocation1] sm:$0xff]
    %3272 = vst [vmem:[#allocation1] ss:$9 sm:$0xff] %v3148
    %3273 = vst [vmem:[%s3219] ss:$9 sm:$0xff] %v3149
    %3274 = vst [vmem:[%s3221] ss:$9 sm:$0xff] %v3150
    %3275 = vst [vmem:[%s3223] ss:$9 sm:$0xff] %v3151
    %3276 = vst [vmem:[%s3225] ss:$9 sm:$0xff] %v3152
    %3277 = vst [vmem:[%s3227] ss:$9 sm:$0xff] %v3153
    %3278 = vst [vmem:[%s3229] ss:$9 sm:$0xff] %v3154
    %v3279 = vld [vmem:[#allocation1] sm:$0xff]
    %3280 = vst [vmem:[#allocation1] ss:$9 sm:$0xff] %v3155
    %3281 = vst [vmem:[%s3219] ss:$9 sm:$0xff] %v3156
    %3282 = vst [vmem:[%s3221] ss:$9 sm:$0xff] %v3157
    %3283 = vst [vmem:[%s3223] ss:$9 sm:$0xff] %v3158
    %3284 = vst [vmem:[%s3225] ss:$9 sm:$0xff] %v3159
    %3285 = vst [vmem:[%s3227] ss:$9 sm:$0xff] %v3160
    %3286 = vst [vmem:[%s3229] ss:$9 sm:$0xff] %v3161
    %v3287 = vld [vmem:[#allocation1] sm:$0xff]
    %vm3296 = vcmask 260096
    %3297 = vst.msk [vmem:[#allocation3] sm:$0x7f] %vm3296, %v3231
    %3298 = vst.msk [vmem:[#allocation3 + $0x8] sm:$0x7f] %vm3296, %v3239
    %3299 = vst.msk [vmem:[#allocation3 + $0x10] sm:$0x7f] %vm3296, %v3247
    %3300 = vst.msk [vmem:[#allocation3 + $0x18] sm:$0x7f] %vm3296, %v3255
    %3301 = vst.msk [vmem:[#allocation3 + $0x20] sm:$0x7f] %vm3296, %v3263
    %3302 = vst.msk [vmem:[#allocation3 + $0x28] sm:$0x7f] %vm3296, %v3271
    %3303 = vst.msk [vmem:[#allocation3 + $0x30] sm:$0x7f] %vm3296, %v3279
    %3304 = vst.msk [vmem:[#allocation3 + $0x38] sm:$0x7f] %vm3296, %v3287
    %v3305 = vld [vmem:[#allocation3] ss:$2 sm:$0x7]
    %s3306 = scalar_lea.vmem [#allocation3], 8
    %v3307 = vld [vmem:[%s3306] ss:$2 sm:$0x7]
    %s3308 = scalar_lea.vmem [#allocation3], 16
    %v3309 = vld [vmem:[%s3308] ss:$2 sm:$0x7]
    %s3310 = scalar_lea.vmem [#allocation3], 24
    %v3311 = vld [vmem:[%s3310] ss:$2 sm:$0x7]
    %s3312 = scalar_lea.vmem [#allocation3], 32
    %v3313 = vld [vmem:[%s3312] ss:$2 sm:$0x7]
    %s3314 = scalar_lea.vmem [#allocation3], 40
    %v3315 = vld [vmem:[%s3314] ss:$2 sm:$0x7]
    %s3316 = scalar_lea.vmem [#allocation3], 48
    %v3317 = vld [vmem:[%s3316] ss:$2 sm:$0x7]
    %s3318 = scalar_lea.vmem [#allocation3], 56
    %v3319 = vld [vmem:[%s3318] ss:$2 sm:$0x7]
    %s3320 = scalar_lea.vmem [#allocation3], 1
    %v3321 = vld [vmem:[%s3320] ss:$2 sm:$0x7]
    %s3322 = scalar_lea.vmem [#allocation3], 9
    %v3323 = vld [vmem:[%s3322] ss:$2 sm:$0x7]
    %s3324 = scalar_lea.vmem [#allocation3], 17
    %v3325 = vld [vmem:[%s3324] ss:$2 sm:$0x7]
    %s3326 = scalar_lea.vmem [#allocation3], 25
    %v3327 = vld [vmem:[%s3326] ss:$2 sm:$0x7]
    %s3328 = scalar_lea.vmem [#allocation3], 33
    %v3329 = vld [vmem:[%s3328] ss:$2 sm:$0x7]
    %s3330 = scalar_lea.vmem [#allocation3], 41
    %v3331 = vld [vmem:[%s3330] ss:$2 sm:$0x7]
    %s3332 = scalar_lea.vmem [#allocation3], 49
    %v3333 = vld [vmem:[%s3332] ss:$2 sm:$0x7]
    %s3334 = scalar_lea.vmem [#allocation3], 57
    %v3335 = vld [vmem:[%s3334] ss:$2 sm:$0x7]
    %s3336 = scalar_lea.vmem [#allocation3], 2
    %v3337 = vld [vmem:[%s3336] ss:$2 sm:$0x7]
    %s3338 = scalar_lea.vmem [#allocation3], 10
    %v3339 = vld [vmem:[%s3338] ss:$2 sm:$0x7]
    %s3340 = scalar_lea.vmem [#allocation3], 18
    %v3341 = vld [vmem:[%s3340] ss:$2 sm:$0x7]
    %s3342 = scalar_lea.vmem [#allocation3], 26
    %v3343 = vld [vmem:[%s3342] ss:$2 sm:$0x7]
    %s3344 = scalar_lea.vmem [#allocation3], 34
    %v3345 = vld [vmem:[%s3344] ss:$2 sm:$0x7]
    %s3346 = scalar_lea.vmem [#allocation3], 42
    %v3347 = vld [vmem:[%s3346] ss:$2 sm:$0x7]
    %s3348 = scalar_lea.vmem [#allocation3], 50
    %v3349 = vld [vmem:[%s3348] ss:$2 sm:$0x7]
    %s3350 = scalar_lea.vmem [#allocation3], 58
    %v3351 = vld [vmem:[%s3350] ss:$2 sm:$0x7]
    %v3352 = vmax.f32 %v3305, %v3321
    %v3353 = vmax.f32 %v3307, %v3323
    %v3354 = vmax.f32 %v3309, %v3325
    %v3355 = vmax.f32 %v3311, %v3327
    %v3356 = vmax.f32 %v3313, %v3329
    %v3357 = vmax.f32 %v3315, %v3331
    %v3358 = vmax.f32 %v3317, %v3333
    %v3359 = vmax.f32 %v3319, %v3335
    %v3360 = vmax.f32 %v3352, %v3337
    %v3361 = vmax.f32 %v3353, %v3339
    %v3362 = vmax.f32 %v3354, %v3341
    %v3363 = vmax.f32 %v3355, %v3343
    %v3364 = vmax.f32 %v3356, %v3345
    %v3365 = vmax.f32 %v3357, %v3347
    %v3366 = vmax.f32 %v3358, %v3349
    %v3367 = vmax.f32 %v3359, %v3351
    %v3368 = vrot.slane %v3362, 4
    %vm3369 = vcmask 1047556
    %v3370 = vsel %vm3369, %v3368, %v3360
    %v3372 = vunpack.c.l.s4 1983009808
    %v3373 = vunpack.c.0.s8 %v3372
    %v3374 = vperm.slane %v3370, %v3373
    %v3375 = vrot.slane %v3363, 4
    %v3376 = vsel %vm3369, %v3375, %v3361
    %v3378 = vunpack.c.l.s4 1983009808
    %v3379 = vunpack.c.0.s8 %v3378
    %v3380 = vperm.slane %v3376, %v3379
    %v3381 = vrot.slane %v3366, 4
    %v3382 = vsel %vm3369, %v3381, %v3364
    %v3384 = vunpack.c.l.s4 1983009808
    %v3385 = vunpack.c.0.s8 %v3384
    %v3386 = vperm.slane %v3382, %v3385
    %v3387 = vrot.slane %v3367, 4
    %v3388 = vsel %vm3369, %v3387, %v3365
    %v3390 = vunpack.c.l.s4 1983009808
    %v3391 = vunpack.c.0.s8 %v3390
    %v3392 = vperm.slane %v3388, %v3391
    %v3393 = vrot.slane %v3380, 4
    %v3394 = vsel %vm3369, %v3393, %v3374
    %v3395 = vrot.slane %v3374, 4
    %v3396 = vsel %vm3369, %v3380, %v3395
    %v3398 = vunpack.c.l.s4 1934713408
    %v3399 = vunpack.c.0.s8 %v3398
    %v3400 = vperm.slane %v3394, %v3399
    %v3402 = vunpack.c.l.s4 1934713408
    %v3403 = vunpack.c.0.s8 %v3402
    %v3404 = vperm.slane %v3396, %v3403
    %v3405 = vrot.slane %v3392, 4
    %v3406 = vsel %vm3369, %v3405, %v3386
    %v3407 = vrot.slane %v3386, 4
    %v3408 = vsel %vm3369, %v3392, %v3407
    %v3410 = vunpack.c.l.s4 1934713408
    %v3411 = vunpack.c.0.s8 %v3410
    %v3412 = vperm.slane %v3406, %v3411
    %v3414 = vunpack.c.l.s4 1934713408
    %v3415 = vunpack.c.0.s8 %v3414
    %v3416 = vperm.slane %v3408, %v3415
    %v3417 = vrot.slane %v3412, 4
    %v3418 = vsel %vm3369, %v3417, %v3400
    %v3419 = vrot.slane %v3400, 4
    %v3420 = vsel %vm3369, %v3412, %v3419
    %v3421 = vrot.slane %v3416, 4
    %v3422 = vsel %vm3369, %v3421, %v3404
    %3424 = vrot.lane.b32.xlu0 %v3420, 32
    %v3425 = vpop.permute.xlu0 %3424
    %3428 = vrot.lane.b32.xlu0 %v3422, 64
    %v3429 = vpop.permute.xlu0 %3428
    %v3431 = vsel %vm1330, %v3418, %v3425
    %v3432 = vsel %vm1364, %v3431, %v3429
    %3433 = vst.msk [vmem:[#allocation4] sm:$0xff] %vm2600, %v3432
    // Predicated region
    $region38: #{tpu_custom_call.1} parent=1 // pred_check
      _
    $region39: #{tpu_custom_call.1} parent=1 // pred_check_branch
      %3435 = sbr.rel (0) target = $region41
    $region40: #{tpu_custom_call.1} parent=1 // pred_region
      %3437 = vsyncadd [#allocation5], 0
      %s3439 = sshll.u32 [#allocation4], 4
      %s3440 = int_to_ptr.vmem [resolvable:$true] %s3439
      %s3441 = sshll.u32 %s9, 4
      %s3442 = int_to_ptr.hbm [resolvable:$true] %s3441
      %3444 = dma.vmem_to_hbm [thread:$0]  %s3440, 128, %s3442, [#allocation5]
    $region41: #{tpu_custom_call.1} parent=1 // pred_fallthru
      _
    // Predicated region
    $region42: #{tpu_custom_call.1} parent=1 // pred_check
      _
    $region43: #{tpu_custom_call.1} parent=1 // pred_check_branch
      %3446 = sbr.rel (0) target = $region45
    $region44: #{tpu_custom_call.1} parent=1 // pred_region
      %3448 = dma.done [#allocation5], 128
    $region45: #{tpu_custom_call.1} parent=1 // pred_fallthru
      _
    %3449 = vsyncpa [#allocation5], 1

</llo_original>
